<compile_context>
chip_gen: v5e
topology: v5e:2x2
jax: 0.10.0
libtpu: 0.0.40
codegen_flags: <defaults>
</compile_context>

<pallas_src>
import numpy as np
import jax
import jax.numpy as jnp
from jax import lax
from jax.experimental import pallas as pl
from jax.experimental.pallas import tpu as pltpu


def _round_up(n, m):
    return ((n + m - 1) // m) * m


def _pick_block_batch(bp):
    """Largest multiple-of-8 divisor of the padded batch, capped, with >=2 grid
    steps whenever the padded batch allows it (v7x megacore sharding)."""
    target = 16 if bp >= 64 else 8
    cands = [d for d in range(8, bp, 8) if bp % d == 0 and d <= target]
    return max(cands) if cands else bp


# ----------------------------------------------------------------------------- #
# Pallas wrapper + kernel
# ----------------------------------------------------------------------------- #
def guney_forward(x, params, *, block_batch=None):
    """GuneyNet forward (eval mode) as a single Pallas TPU kernel call."""
    f32, bf16 = jnp.float32, jnp.bfloat16

    B, NB, C, T = x.shape
    ws = params["spatial_w"].astype(f32)            # (F, C)
    F = ws.shape[0]
    w1 = params["time1_w"].astype(f32)              # (F, F, 2)
    w2 = params["time2_w"].astype(f32)              # (F, F, K2)
    K2 = w2.shape[-1]
    wfc = params["fc_w"].astype(f32)                # (n_classes, F*T1)
    n_classes = wfc.shape[0]
    wb = params["band_w"].astype(f32)               # (NB,)
    bs = params["spatial_b"].astype(f32)
    b1 = params["time1_b"].astype(f32)
    b2 = params["time2_b"].astype(f32)
    bfc = params["fc_b"].astype(f32)

    T1 = (T - 2) // 2 + 1                           # time1: kernel 2, stride 2
    PL = (K2 - 1) // 2                              # "same" pad left (4)
    Fp = _round_up(F, 128)                          # 120 -> 128 (full MXU tiles)
    Ncp = _round_up(n_classes, 128)                 # lane-dense output block
    K1 = NB * C * 2                                 # folded (band, chan, parity)

    # ---- batch padding / blocking (all blocks sublane-aligned) ----
    Bp = _round_up(B, 8)
    if block_batch is None:
        BB = _pick_block_batch(Bp)
    else:
        BB = int(block_batch)
        if BB % 8 != 0 or Bp % BB != 0:
            raise ValueError("block_batch must be a multiple of 8 dividing the padded batch")
    nblk = Bp // BB
    BT = BB * T1                                    # rows per block, (t, b) order

    # ---- fold 1: band + spatial + time1 -> one GEMM (f32 math, bf16 operand) --
    a_even = w1[:, :, 0] @ ws                       # (F, C)
    a_odd = w1[:, :, 1] @ ws                        # (F, C)
    a_stack = jnp.stack([a_even, a_odd], axis=-1)   # (F, C, 2)
    w1c = wb[None, :, None, None] * a_stack[:, None, :, :]        # (F, NB, C, 2)
    w1comb = jnp.zeros((K1, Fp), f32).at[:, :F].set(w1c.reshape(F, K1).T).astype(bf16)
    b1_eff = (w1[:, :, 0] + w1[:, :, 1]) @ bs + b1                # fold spatial bias
    b1p = jnp.zeros((1, Fp), f32).at[0, :F].set(b1_eff)

    # ---- fold 2: "same"-padded time2 conv + flatten + fc -> per-t weight ------
    wfc3 = wfc.reshape(n_classes, F, T1)            # [m, h, t] (torch Flatten order)
    A = jnp.einsum("hgk,mht->kgtm", w2, wfc3)       # (K2, F, T1, m)
    M = jnp.zeros((T1, F, n_classes), f32)          # M[t', g, m]
    for k in range(K2):
        lo, hi = max(0, k - PL), min(T1, T1 + k - PL)
        if hi > lo:
            M = M.at[lo:hi].add(
                jnp.transpose(A[k, :, lo + PL - k:hi + PL - k, :], (1, 0, 2)))
    wcomb = jnp.zeros((T1, Fp, Ncp), f32).at[:, :F, :n_classes].set(M)
    wcomb = wcomb.reshape(T1 * Fp, Ncp).astype(bf16)
    bias_c = bfc + jnp.einsum("h,mht->m", b2, wfc3)               # fold time2 bias
    bcp = jnp.zeros((1, Ncp), f32).at[0, :n_classes].set(bias_c)

    # ---- input layout: rows = (block, t, b), cols = (band, chan, parity), bf16 -
    xp = x.astype(bf16)
    if Bp != B:
        xp = jnp.concatenate([xp, jnp.zeros((Bp - B, NB, C, T), bf16)], axis=0)
    xr = xp[..., :2 * T1].reshape(nblk, BB, NB, C, T1, 2)
    xr = xr.transpose(0, 4, 1, 2, 3, 5).reshape(nblk * BT, K1)

    weights = (w1comb, b1p, wcomb, bcp)

    def kernel(x_ref, w1_ref, b1_ref, wfc_ref, bfc_ref, out_ref, y1_ref):
        # ---- stage 1: folded band + spatial + time1 conv + relu -> (BT, Fp)
        y1 = jnp.dot(x_ref[...], w1_ref[...], preferred_element_type=jnp.float32)
        y1_ref[...] = jnp.maximum(y1 + b1_ref[...], 0.0)

        # ---- stage 2 (time2 + flatten + fc, folded): accumulate over time steps
        def body(t, acc):
            r = pl.multiple_of(t * BB, BB)
            w = pl.multiple_of(t * Fp, Fp)
            return acc + jnp.dot(y1_ref[pl.ds(r, BB), :].astype(jnp.bfloat16),
                                 wfc_ref[pl.ds(w, Fp), :],
                                 preferred_element_type=jnp.float32)

        acc = lax.fori_loop(0, T1, body, jnp.zeros((BB, Ncp), jnp.float32),
                            unroll=min(8, T1))
        out_ref[...] = acc + bfc_ref[...]

    # ---- explicit VMEM budget and cost estimate ----
    def _nbytes(a):
        return int(a.size) * a.dtype.itemsize

    w_bytes = sum(_nbytes(a) for a in weights)

    def _vmem_limit(weight_bufs):
        need = (2 * BT * K1 * 2            # x block, double-buffered, bf16
                + weight_bufs * w_bytes    # invariant weights
                + 2 * BB * Ncp * 4         # out block, double-buffered
                + BT * Fp * 4              # y1 scratch (f32)
                + BT * Fp * 4              # stage-1 f32 temporary
                + BB * Ncp * 4)            # fc accumulator
        return int(min(max(need * 3 // 2, 32 << 20), 128 << 20))

    cost = pl.CostEstimate(
        flops=2 * Bp * T1 * Fp * (K1 + Ncp),
        transcendentals=0,
        bytes_accessed=int(2 * nblk * BT * K1 + w_bytes + Bp * Ncp * 4))

    def _run(single_buffer_weights):
        def w_spec(a):
            zeros = (0,) * a.ndim
            kw = {"pipeline_mode": pl.Buffered(1)} if single_buffer_weights else {}
            return pl.BlockSpec(a.shape, lambda i, _z=zeros: _z, **kw)

        in_specs = [pl.BlockSpec((BT, K1), lambda i: (i, 0))]
        in_specs += [w_spec(a) for a in weights]
        return pl.pallas_call(
            kernel,
            out_shape=jax.ShapeDtypeStruct((Bp, Ncp), f32),
            grid=(nblk,),
            in_specs=in_specs,
            out_specs=pl.BlockSpec((BB, Ncp), lambda i: (i, 0)),
            scratch_shapes=[pltpu.VMEM((BT, Fp), jnp.float32)],
            compiler_params=pltpu.CompilerParams(
                dimension_semantics=("parallel",),
                vmem_limit_bytes=_vmem_limit(1 if single_buffer_weights else 2)),
            cost_estimate=cost,
        )(xr, *weights)

    try:
        out = _run(True)
    except Exception:
        # Fallback for JAX versions without BlockSpec pipeline_mode / Buffered(1).
        out = _run(False)

    return out[:B, :n_classes]


# ----------------------------------------------------------------------------- #
# Deterministic parameter initialization (mirrors GuneyNet._reset_parameters)
# ----------------------------------------------------------------------------- #
def init_params(key, n_channels, n_samples, n_classes, n_bands):
    F = 120
    K2 = 10
    T1 = (n_samples - 2) // 2 + 1
    ks = jax.random.split(key, 4)
    std = 1e-2  # _narrow_normal_weight_zero_bias
    return dict(
        band_w=jnp.ones((n_bands,), jnp.float32),                       # ones_ init
        spatial_w=std * jax.random.normal(ks[0], (F, n_channels), jnp.float32),
        spatial_b=jnp.zeros((F,), jnp.float32),
        time1_w=std * jax.random.normal(ks[1], (F, F, 2), jnp.float32),
        time1_b=jnp.zeros((F,), jnp.float32),
        time2_w=std * jax.random.normal(ks[2], (F, F, K2), jnp.float32),
        time2_b=jnp.zeros((F,), jnp.float32),
        fc_w=jnp.sqrt(2.0 / (F * T1 + n_classes)) *                     # xavier_normal_
             jax.random.normal(ks[3], (n_classes, F * T1), jnp.float32),
        fc_b=jnp.zeros((n_classes,), jnp.float32),
    )


# ----------------------------------------------------------------------------- #
# Pure-JAX reference (faithful to the PyTorch conv semantics) for verification
# ----------------------------------------------------------------------------- #
def reference_forward(x, params):
    wb, ws, bs = params["band_w"], params["spatial_w"], params["spatial_b"]
    w1, b1 = params["time1_w"], params["time1_b"]
    w2, b2 = params["time2_w"], params["time2_b"]
    wfc, bfc = params["fc_w"], params["fc_b"]
    B, n_bands, C, T = x.shape
    T1 = (T - 2) // 2 + 1
    K2 = w2.shape[-1]

    y0 = jnp.einsum("n,bnct->bct", wb, x)                               # band 1x1 conv
    s = jnp.einsum("fc,bct->bft", ws, y0) + bs[None, :, None]           # spatial conv
    sp = s[..., :2 * T1].reshape(B, -1, T1, 2)                          # kernel 2, stride 2
    y1 = jnp.einsum("gfk,bftk->bgt", w1, sp) + b1[None, :, None]
    y1 = jnp.maximum(y1, 0.0)
    y1p = jnp.pad(y1, ((0, 0), (0, 0), ((K2 - 1) // 2, K2 - 1 - (K2 - 1) // 2)))
    win = jnp.stack([y1p[:, :, k:k + T1] for k in range(K2)], axis=-1)  # kernel 10, same
    y2 = jnp.einsum("hgk,bgtk->bht", w2, win) + b2[None, :, None]
    flat = y2.reshape(B, -1)
    return flat @ wfc.T + bfc[None, :]


if __name__ == "__main__":
    # X is (batch, n_bands, n_channels, n_samples)
    B, n_bands, n_channels, n_samples, n_classes = 2, 3, 8, 16, 4

    key = jax.random.PRNGKey(0)
    kx, kp = jax.random.split(key)
    x = jax.random.normal(kx, (B, n_bands, n_channels, n_samples), jnp.float32)
    params = init_params(kp, n_channels, n_samples, n_classes, n_bands)

    out = guney_forward(x, params)
    out = jax.block_until_ready(out)

    ref = reference_forward(x, params)
    assert out.shape == (B, n_classes)
    # bf16 MXU operands with f32 accumulation: tolerance relaxed accordingly
    # (logit scale here is ~3e-3; observed error is O(1e-5)).
    np.testing.assert_allclose(np.asarray(out), np.asarray(ref), rtol=2e-2, atol=5e-4)
    print("KERNEL_OK")
</pallas_src>

<mosaic_0001>
module attributes {stable_mosaic.version = 11 : i64} {
  func.func @kernel(%arg0: i32, %arg1: memref<64x48xbf16, #tpu.memory_space<vmem>>, %arg2: memref<48x128xbf16, #tpu.memory_space<vmem>>, %arg3: memref<1x128xf32, #tpu.memory_space<vmem>>, %arg4: memref<1024x128xbf16, #tpu.memory_space<vmem>>, %arg5: memref<1x128xf32, #tpu.memory_space<vmem>>, %arg6: memref<8x128xf32, #tpu.memory_space<vmem>>, %arg7: memref<64x128xf32, #tpu.memory_space<vmem>>) attributes {dimension_semantics = [#tpu.dimension_semantics<parallel>], iteration_bounds = array<i64: 1>, scalar_prefetch = 0 : i64, scratch_operands = 1 : i64, tpu.core_type = #tpu.core_type<tc>, window_params = [{transform_indices = @transform_0, window_bounds = array<i64: 64, 48>}, {pipeline_mode = #tpu.pipeline_mode<synchronous>, transform_indices = @transform_1, window_bounds = array<i64: 48, 128>}, {pipeline_mode = #tpu.pipeline_mode<synchronous>, transform_indices = @transform_2, window_bounds = array<i64: 1, 128>}, {pipeline_mode = #tpu.pipeline_mode<synchronous>, transform_indices = @transform_3, window_bounds = array<i64: 1024, 128>}, {pipeline_mode = #tpu.pipeline_mode<synchronous>, transform_indices = @transform_4, window_bounds = array<i64: 1, 128>}, {transform_indices = @transform_5, window_bounds = array<i64: 8, 128>}]} {
    %c0 = arith.constant 0 : index
    %c0_0 = arith.constant 0 : index
    %0 = vector.load %arg1[%c0, %c0_0] : memref<64x48xbf16, #tpu.memory_space<vmem>>, vector<64x48xbf16>
    %c0_1 = arith.constant 0 : index
    %c0_2 = arith.constant 0 : index
    %1 = vector.load %arg2[%c0_1, %c0_2] : memref<48x128xbf16, #tpu.memory_space<vmem>>, vector<48x128xbf16>
    %cst = arith.constant dense<0.000000e+00> : vector<64x128xf32>
    %2 = tpu.matmul %0, %1, %cst {dimension_numbers = #tpu.dot_dimension_numbers<[1], [0], [0], [1], [0, 0, 1, 1], [], []>} : vector<64x48xbf16>, vector<48x128xbf16>, vector<64x128xf32> -> vector<64x128xf32>
    %c0_3 = arith.constant 0 : index
    %c0_4 = arith.constant 0 : index
    %3 = vector.load %arg3[%c0_3, %c0_4] : memref<1x128xf32, #tpu.memory_space<vmem>>, vector<1x128xf32>
    %4 = vector.broadcast %3 : vector<1x128xf32> to vector<64x128xf32>
    %5 = arith.addf %2, %4 : vector<64x128xf32>
    %cst_5 = arith.constant 0.000000e+00 : f32
    %6 = vector.broadcast %cst_5 : f32 to vector<64x128xf32>
    %7 = arith.maximumf %5, %6 : vector<64x128xf32>
    %c0_6 = arith.constant 0 : index
    %c0_7 = arith.constant 0 : index
    %8 = vector.load %arg7[%c0_6, %c0_7] : memref<64x128xf32, #tpu.memory_space<vmem>>, vector<64x128xf32>
    tpu.vector_store %arg7[%c0_6, %c0_7], %7 {strides = array<i32>} : memref<64x128xf32, #tpu.memory_space<vmem>>, vector<64x128xf32>,
    %cst_8 = arith.constant 0.000000e+00 : f32
    %9 = vector.broadcast %cst_8 : f32 to vector<8x128xf32>
    %c0_i32 = arith.constant 0 : i32
    %c8_i32 = arith.constant 8 : i32
    %10 = arith.muli %c0_i32, %c8_i32 : i32
    %11 = tpu.assume_multiple %10, 8 : i32
    %c128_i32 = arith.constant 128 : i32
    %12 = arith.muli %c0_i32, %c128_i32 : i32
    %13 = tpu.assume_multiple %12, 128 : i32
    %14 = arith.index_cast %11 : i32 to index
    %c0_9 = arith.constant 0 : index
    %15 = vector.load %arg7[%14, %c0_9] : memref<64x128xf32, #tpu.memory_space<vmem>>, vector<8x128xf32>
    %16 = arith.truncf %15 : vector<8x128xf32> to vector<8x128xbf16>
    %17 = arith.index_cast %13 : i32 to index
    %c0_10 = arith.constant 0 : index
    %18 = vector.load %arg4[%17, %c0_10] : memref<1024x128xbf16, #tpu.memory_space<vmem>>, vector<128x128xbf16>
    %cst_11 = arith.constant dense<0.000000e+00> : vector<8x128xf32>
    %19 = tpu.matmul %16, %18, %cst_11 {dimension_numbers = #tpu.dot_dimension_numbers<[1], [0], [0], [1], [0, 0, 1, 1], [], []>} : vector<8x128xbf16>, vector<128x128xbf16>, vector<8x128xf32> -> vector<8x128xf32>
    %20 = arith.addf %9, %19 : vector<8x128xf32>
    %c1_i32 = arith.constant 1 : i32
    %c8_i32_12 = arith.constant 8 : i32
    %21 = arith.muli %c1_i32, %c8_i32_12 : i32
    %22 = tpu.assume_multiple %21, 8 : i32
    %c128_i32_13 = arith.constant 128 : i32
    %23 = arith.muli %c1_i32, %c128_i32_13 : i32
    %24 = tpu.assume_multiple %23, 128 : i32
    %25 = arith.index_cast %22 : i32 to index
    %c0_14 = arith.constant 0 : index
    %26 = vector.load %arg7[%25, %c0_14] : memref<64x128xf32, #tpu.memory_space<vmem>>, vector<8x128xf32>
    %27 = arith.truncf %26 : vector<8x128xf32> to vector<8x128xbf16>
    %28 = arith.index_cast %24 : i32 to index
    %c0_15 = arith.constant 0 : index
    %29 = vector.load %arg4[%28, %c0_15] : memref<1024x128xbf16, #tpu.memory_space<vmem>>, vector<128x128xbf16>
    %cst_16 = arith.constant dense<0.000000e+00> : vector<8x128xf32>
    %30 = tpu.matmul %27, %29, %cst_16 {dimension_numbers = #tpu.dot_dimension_numbers<[1], [0], [0], [1], [0, 0, 1, 1], [], []>} : vector<8x128xbf16>, vector<128x128xbf16>, vector<8x128xf32> -> vector<8x128xf32>
    %31 = arith.addf %20, %30 : vector<8x128xf32>
    %c2_i32 = arith.constant 2 : i32
    %c8_i32_17 = arith.constant 8 : i32
    %32 = arith.muli %c2_i32, %c8_i32_17 : i32
    %33 = tpu.assume_multiple %32, 8 : i32
    %c128_i32_18 = arith.constant 128 : i32
    %34 = arith.muli %c2_i32, %c128_i32_18 : i32
    %35 = tpu.assume_multiple %34, 128 : i32
    %36 = arith.index_cast %33 : i32 to index
    %c0_19 = arith.constant 0 : index
    %37 = vector.load %arg7[%36, %c0_19] : memref<64x128xf32, #tpu.memory_space<vmem>>, vector<8x128xf32>
    %38 = arith.truncf %37 : vector<8x128xf32> to vector<8x128xbf16>
    %39 = arith.index_cast %35 : i32 to index
    %c0_20 = arith.constant 0 : index
    %40 = vector.load %arg4[%39, %c0_20] : memref<1024x128xbf16, #tpu.memory_space<vmem>>, vector<128x128xbf16>
    %cst_21 = arith.constant dense<0.000000e+00> : vector<8x128xf32>
    %41 = tpu.matmul %38, %40, %cst_21 {dimension_numbers = #tpu.dot_dimension_numbers<[1], [0], [0], [1], [0, 0, 1, 1], [], []>} : vector<8x128xbf16>, vector<128x128xbf16>, vector<8x128xf32> -> vector<8x128xf32>
    %42 = arith.addf %31, %41 : vector<8x128xf32>
    %c3_i32 = arith.constant 3 : i32
    %c8_i32_22 = arith.constant 8 : i32
    %43 = arith.muli %c3_i32, %c8_i32_22 : i32
    %44 = tpu.assume_multiple %43, 8 : i32
    %c128_i32_23 = arith.constant 128 : i32
    %45 = arith.muli %c3_i32, %c128_i32_23 : i32
    %46 = tpu.assume_multiple %45, 128 : i32
    %47 = arith.index_cast %44 : i32 to index
    %c0_24 = arith.constant 0 : index
    %48 = vector.load %arg7[%47, %c0_24] : memref<64x128xf32, #tpu.memory_space<vmem>>, vector<8x128xf32>
    %49 = arith.truncf %48 : vector<8x128xf32> to vector<8x128xbf16>
    %50 = arith.index_cast %46 : i32 to index
    %c0_25 = arith.constant 0 : index
    %51 = vector.load %arg4[%50, %c0_25] : memref<1024x128xbf16, #tpu.memory_space<vmem>>, vector<128x128xbf16>
    %cst_26 = arith.constant dense<0.000000e+00> : vector<8x128xf32>
    %52 = tpu.matmul %49, %51, %cst_26 {dimension_numbers = #tpu.dot_dimension_numbers<[1], [0], [0], [1], [0, 0, 1, 1], [], []>} : vector<8x128xbf16>, vector<128x128xbf16>, vector<8x128xf32> -> vector<8x128xf32>
    %53 = arith.addf %42, %52 : vector<8x128xf32>
    %c4_i32 = arith.constant 4 : i32
    %c8_i32_27 = arith.constant 8 : i32
    %54 = arith.muli %c4_i32, %c8_i32_27 : i32
    %55 = tpu.assume_multiple %54, 8 : i32
    %c128_i32_28 = arith.constant 128 : i32
    %56 = arith.muli %c4_i32, %c128_i32_28 : i32
    %57 = tpu.assume_multiple %56, 128 : i32
    %58 = arith.index_cast %55 : i32 to index
    %c0_29 = arith.constant 0 : index
    %59 = vector.load %arg7[%58, %c0_29] : memref<64x128xf32, #tpu.memory_space<vmem>>, vector<8x128xf32>
    %60 = arith.truncf %59 : vector<8x128xf32> to vector<8x128xbf16>
    %61 = arith.index_cast %57 : i32 to index
    %c0_30 = arith.constant 0 : index
    %62 = vector.load %arg4[%61, %c0_30] : memref<1024x128xbf16, #tpu.memory_space<vmem>>, vector<128x128xbf16>
    %cst_31 = arith.constant dense<0.000000e+00> : vector<8x128xf32>
    %63 = tpu.matmul %60, %62, %cst_31 {dimension_numbers = #tpu.dot_dimension_numbers<[1], [0], [0], [1], [0, 0, 1, 1], [], []>} : vector<8x128xbf16>, vector<128x128xbf16>, vector<8x128xf32> -> vector<8x128xf32>
    %64 = arith.addf %53, %63 : vector<8x128xf32>
    %c5_i32 = arith.constant 5 : i32
    %c8_i32_32 = arith.constant 8 : i32
    %65 = arith.muli %c5_i32, %c8_i32_32 : i32
    %66 = tpu.assume_multiple %65, 8 : i32
    %c128_i32_33 = arith.constant 128 : i32
    %67 = arith.muli %c5_i32, %c128_i32_33 : i32
    %68 = tpu.assume_multiple %67, 128 : i32
    %69 = arith.index_cast %66 : i32 to index
    %c0_34 = arith.constant 0 : index
    %70 = vector.load %arg7[%69, %c0_34] : memref<64x128xf32, #tpu.memory_space<vmem>>, vector<8x128xf32>
    %71 = arith.truncf %70 : vector<8x128xf32> to vector<8x128xbf16>
    %72 = arith.index_cast %68 : i32 to index
    %c0_35 = arith.constant 0 : index
    %73 = vector.load %arg4[%72, %c0_35] : memref<1024x128xbf16, #tpu.memory_space<vmem>>, vector<128x128xbf16>
    %cst_36 = arith.constant dense<0.000000e+00> : vector<8x128xf32>
    %74 = tpu.matmul %71, %73, %cst_36 {dimension_numbers = #tpu.dot_dimension_numbers<[1], [0], [0], [1], [0, 0, 1, 1], [], []>} : vector<8x128xbf16>, vector<128x128xbf16>, vector<8x128xf32> -> vector<8x128xf32>
    %75 = arith.addf %64, %74 : vector<8x128xf32>
    %c6_i32 = arith.constant 6 : i32
    %c8_i32_37 = arith.constant 8 : i32
    %76 = arith.muli %c6_i32, %c8_i32_37 : i32
    %77 = tpu.assume_multiple %76, 8 : i32
    %c128_i32_38 = arith.constant 128 : i32
    %78 = arith.muli %c6_i32, %c128_i32_38 : i32
    %79 = tpu.assume_multiple %78, 128 : i32
    %80 = arith.index_cast %77 : i32 to index
    %c0_39 = arith.constant 0 : index
    %81 = vector.load %arg7[%80, %c0_39] : memref<64x128xf32, #tpu.memory_space<vmem>>, vector<8x128xf32>
    %82 = arith.truncf %81 : vector<8x128xf32> to vector<8x128xbf16>
    %83 = arith.index_cast %79 : i32 to index
    %c0_40 = arith.constant 0 : index
    %84 = vector.load %arg4[%83, %c0_40] : memref<1024x128xbf16, #tpu.memory_space<vmem>>, vector<128x128xbf16>
    %cst_41 = arith.constant dense<0.000000e+00> : vector<8x128xf32>
    %85 = tpu.matmul %82, %84, %cst_41 {dimension_numbers = #tpu.dot_dimension_numbers<[1], [0], [0], [1], [0, 0, 1, 1], [], []>} : vector<8x128xbf16>, vector<128x128xbf16>, vector<8x128xf32> -> vector<8x128xf32>
    %86 = arith.addf %75, %85 : vector<8x128xf32>
    %c7_i32 = arith.constant 7 : i32
    %c8_i32_42 = arith.constant 8 : i32
    %87 = arith.muli %c7_i32, %c8_i32_42 : i32
    %88 = tpu.assume_multiple %87, 8 : i32
    %c128_i32_43 = arith.constant 128 : i32
    %89 = arith.muli %c7_i32, %c128_i32_43 : i32
    %90 = tpu.assume_multiple %89, 128 : i32
    %91 = arith.index_cast %88 : i32 to index
    %c0_44 = arith.constant 0 : index
    %92 = vector.load %arg7[%91, %c0_44] : memref<64x128xf32, #tpu.memory_space<vmem>>, vector<8x128xf32>
    %93 = arith.truncf %92 : vector<8x128xf32> to vector<8x128xbf16>
    %94 = arith.index_cast %90 : i32 to index
    %c0_45 = arith.constant 0 : index
    %95 = vector.load %arg4[%94, %c0_45] : memref<1024x128xbf16, #tpu.memory_space<vmem>>, vector<128x128xbf16>
    %cst_46 = arith.constant dense<0.000000e+00> : vector<8x128xf32>
    %96 = tpu.matmul %93, %95, %cst_46 {dimension_numbers = #tpu.dot_dimension_numbers<[1], [0], [0], [1], [0, 0, 1, 1], [], []>} : vector<8x128xbf16>, vector<128x128xbf16>, vector<8x128xf32> -> vector<8x128xf32>
    %97 = arith.addf %86, %96 : vector<8x128xf32>
    %c8_i32_47 = arith.constant 8 : i32
    %c0_48 = arith.constant 0 : index
    %c0_49 = arith.constant 0 : index
    %98 = vector.load %arg5[%c0_48, %c0_49] : memref<1x128xf32, #tpu.memory_space<vmem>>, vector<1x128xf32>
    %99 = vector.broadcast %98 : vector<1x128xf32> to vector<8x128xf32>
    %100 = arith.addf %97, %99 : vector<8x128xf32>
    %c0_50 = arith.constant 0 : index
    %c0_51 = arith.constant 0 : index
    %101 = vector.load %arg6[%c0_50, %c0_51] : memref<8x128xf32, #tpu.memory_space<vmem>>, vector<8x128xf32>
    tpu.vector_store %arg6[%c0_50, %c0_51], %100 {strides = array<i32>} : memref<8x128xf32, #tpu.memory_space<vmem>>, vector<8x128xf32>,
    return
  }
  func.func @transform_0(%arg0: i32) -> (i32, i32) {
    %c0_i32 = arith.constant 0 : i32
    %c0_i32_0 = arith.constant 0 : i32
    return %arg0, %c0_i32 : i32, i32
  }
  func.func @transform_1(%arg0: i32) -> (i32, i32) {
    %c0_i32 = arith.constant 0 : i32
    %c0_i32_0 = arith.constant 0 : i32
    %c0_i32_1 = arith.constant 0 : i32
    return %c0_i32, %c0_i32_0 : i32, i32
  }
  func.func @transform_2(%arg0: i32) -> (i32, i32) {
    %c0_i32 = arith.constant 0 : i32
    %c0_i32_0 = arith.constant 0 : i32
    %c0_i32_1 = arith.constant 0 : i32
    return %c0_i32, %c0_i32_0 : i32, i32
  }
  func.func @transform_3(%arg0: i32) -> (i32, i32) {
    %c0_i32 = arith.constant 0 : i32
    %c0_i32_0 = arith.constant 0 : i32
    %c0_i32_1 = arith.constant 0 : i32
    return %c0_i32, %c0_i32_0 : i32, i32
  }
  func.func @transform_4(%arg0: i32) -> (i32, i32) {
    %c0_i32 = arith.constant 0 : i32
    %c0_i32_0 = arith.constant 0 : i32
    %c0_i32_1 = arith.constant 0 : i32
    return %c0_i32, %c0_i32_0 : i32, i32
  }
  func.func @transform_5(%arg0: i32) -> (i32, i32) {
    %c0_i32 = arith.constant 0 : i32
    %c0_i32_0 = arith.constant 0 : i32
    return %arg0, %c0_i32 : i32, i32
  }
}

module attributes {stable_mosaic.version = 11 : i64} {
  func.func @kernel(%arg0: i32, %arg1: memref<64x48xbf16, #tpu.memory_space<vmem>>, %arg2: memref<48x128xbf16, #tpu.memory_space<vmem>>, %arg3: memref<1x128xf32, #tpu.memory_space<vmem>>, %arg4: memref<1024x128xbf16, #tpu.memory_space<vmem>>, %arg5: memref<1x128xf32, #tpu.memory_space<vmem>>, %arg6: memref<8x128xf32, #tpu.memory_space<vmem>>, %arg7: memref<64x128xf32, #tpu.memory_space<vmem>>) attributes {dimension_semantics = [#tpu.dimension_semantics<parallel>], iteration_bounds = array<i64: 1>, scalar_prefetch = 0 : i64, scratch_operands = 1 : i64, tpu.core_type = #tpu.core_type<tc>, window_params = [{transform_indices = @transform_0, window_bounds = array<i64: 64, 48>}, {pipeline_mode = #tpu.pipeline_mode<synchronous>, transform_indices = @transform_1, window_bounds = array<i64: 48, 128>}, {pipeline_mode = #tpu.pipeline_mode<synchronous>, transform_indices = @transform_2, window_bounds = array<i64: 1, 128>}, {pipeline_mode = #tpu.pipeline_mode<synchronous>, transform_indices = @transform_3, window_bounds = array<i64: 1024, 128>}, {pipeline_mode = #tpu.pipeline_mode<synchronous>, transform_indices = @transform_4, window_bounds = array<i64: 1, 128>}, {transform_indices = @transform_5, window_bounds = array<i64: 8, 128>}]} {
    %c0 = arith.constant 0 : index
    %c0_0 = arith.constant 0 : index
    %0 = vector.load %arg1[%c0, %c0_0] : memref<64x48xbf16, #tpu.memory_space<vmem>>, vector<64x48xbf16>
    %c0_1 = arith.constant 0 : index
    %c0_2 = arith.constant 0 : index
    %1 = vector.load %arg2[%c0_1, %c0_2] : memref<48x128xbf16, #tpu.memory_space<vmem>>, vector<48x128xbf16>
    %cst = arith.constant dense<0.000000e+00> : vector<64x128xf32>
    %2 = tpu.matmul %0, %1, %cst {dimension_numbers = #tpu.dot_dimension_numbers<[1], [0], [0], [1], [0, 0, 1, 1], [], []>} : vector<64x48xbf16>, vector<48x128xbf16>, vector<64x128xf32> -> vector<64x128xf32>
    %c0_3 = arith.constant 0 : index
    %c0_4 = arith.constant 0 : index
    %3 = vector.load %arg3[%c0_3, %c0_4] : memref<1x128xf32, #tpu.memory_space<vmem>>, vector<1x128xf32>
    %4 = vector.broadcast %3 : vector<1x128xf32> to vector<64x128xf32>
    %5 = arith.addf %2, %4 : vector<64x128xf32>
    %cst_5 = arith.constant 0.000000e+00 : f32
    %6 = vector.broadcast %cst_5 : f32 to vector<64x128xf32>
    %7 = arith.maximumf %5, %6 : vector<64x128xf32>
    %c0_6 = arith.constant 0 : index
    %c0_7 = arith.constant 0 : index
    %8 = vector.load %arg7[%c0_6, %c0_7] : memref<64x128xf32, #tpu.memory_space<vmem>>, vector<64x128xf32>
    tpu.vector_store %arg7[%c0_6, %c0_7], %7 {strides = array<i32>} : memref<64x128xf32, #tpu.memory_space<vmem>>, vector<64x128xf32>,
    %cst_8 = arith.constant 0.000000e+00 : f32
    %9 = vector.broadcast %cst_8 : f32 to vector<8x128xf32>
    %c0_i32 = arith.constant 0 : i32
    %c8_i32 = arith.constant 8 : i32
    %10 = arith.muli %c0_i32, %c8_i32 : i32
    %11 = tpu.assume_multiple %10, 8 : i32
    %c128_i32 = arith.constant 128 : i32
    %12 = arith.muli %c0_i32, %c128_i32 : i32
    %13 = tpu.assume_multiple %12, 128 : i32
    %14 = arith.index_cast %11 : i32 to index
    %c0_9 = arith.constant 0 : index
    %15 = vector.load %arg7[%14, %c0_9] : memref<64x128xf32, #tpu.memory_space<vmem>>, vector<8x128xf32>
    %16 = arith.truncf %15 : vector<8x128xf32> to vector<8x128xbf16>
    %17 = arith.index_cast %13 : i32 to index
    %c0_10 = arith.constant 0 : index
    %18 = vector.load %arg4[%17, %c0_10] : memref<1024x128xbf16, #tpu.memory_space<vmem>>, vector<128x128xbf16>
    %cst_11 = arith.constant dense<0.000000e+00> : vector<8x128xf32>
    %19 = tpu.matmul %16, %18, %cst_11 {dimension_numbers = #tpu.dot_dimension_numbers<[1], [0], [0], [1], [0, 0, 1, 1], [], []>} : vector<8x128xbf16>, vector<128x128xbf16>, vector<8x128xf32> -> vector<8x128xf32>
    %20 = arith.addf %9, %19 : vector<8x128xf32>
    %c1_i32 = arith.constant 1 : i32
    %c8_i32_12 = arith.constant 8 : i32
    %21 = arith.muli %c1_i32, %c8_i32_12 : i32
    %22 = tpu.assume_multiple %21, 8 : i32
    %c128_i32_13 = arith.constant 128 : i32
    %23 = arith.muli %c1_i32, %c128_i32_13 : i32
    %24 = tpu.assume_multiple %23, 128 : i32
    %25 = arith.index_cast %22 : i32 to index
    %c0_14 = arith.constant 0 : index
    %26 = vector.load %arg7[%25, %c0_14] : memref<64x128xf32, #tpu.memory_space<vmem>>, vector<8x128xf32>
    %27 = arith.truncf %26 : vector<8x128xf32> to vector<8x128xbf16>
    %28 = arith.index_cast %24 : i32 to index
    %c0_15 = arith.constant 0 : index
    %29 = vector.load %arg4[%28, %c0_15] : memref<1024x128xbf16, #tpu.memory_space<vmem>>, vector<128x128xbf16>
    %cst_16 = arith.constant dense<0.000000e+00> : vector<8x128xf32>
    %30 = tpu.matmul %27, %29, %cst_16 {dimension_numbers = #tpu.dot_dimension_numbers<[1], [0], [0], [1], [0, 0, 1, 1], [], []>} : vector<8x128xbf16>, vector<128x128xbf16>, vector<8x128xf32> -> vector<8x128xf32>
    %31 = arith.addf %20, %30 : vector<8x128xf32>
    %c2_i32 = arith.constant 2 : i32
    %c8_i32_17 = arith.constant 8 : i32
    %32 = arith.muli %c2_i32, %c8_i32_17 : i32
    %33 = tpu.assume_multiple %32, 8 : i32
    %c128_i32_18 = arith.constant 128 : i32
    %34 = arith.muli %c2_i32, %c128_i32_18 : i32
    %35 = tpu.assume_multiple %34, 128 : i32
    %36 = arith.index_cast %33 : i32 to index
    %c0_19 = arith.constant 0 : index
    %37 = vector.load %arg7[%36, %c0_19] : memref<64x128xf32, #tpu.memory_space<vmem>>, vector<8x128xf32>
    %38 = arith.truncf %37 : vector<8x128xf32> to vector<8x128xbf16>
    %39 = arith.index_cast %35 : i32 to index
    %c0_20 = arith.constant 0 : index
    %40 = vector.load %arg4[%39, %c0_20] : memref<1024x128xbf16, #tpu.memory_space<vmem>>, vector<128x128xbf16>
    %cst_21 = arith.constant dense<0.000000e+00> : vector<8x128xf32>
    %41 = tpu.matmul %38, %40, %cst_21 {dimension_numbers = #tpu.dot_dimension_numbers<[1], [0], [0], [1], [0, 0, 1, 1], [], []>} : vector<8x128xbf16>, vector<128x128xbf16>, vector<8x128xf32> -> vector<8x128xf32>
    %42 = arith.addf %31, %41 : vector<8x128xf32>
    %c3_i32 = arith.constant 3 : i32
    %c8_i32_22 = arith.constant 8 : i32
    %43 = arith.muli %c3_i32, %c8_i32_22 : i32
    %44 = tpu.assume_multiple %43, 8 : i32
    %c128_i32_23 = arith.constant 128 : i32
    %45 = arith.muli %c3_i32, %c128_i32_23 : i32
    %46 = tpu.assume_multiple %45, 128 : i32
    %47 = arith.index_cast %44 : i32 to index
    %c0_24 = arith.constant 0 : index
    %48 = vector.load %arg7[%47, %c0_24] : memref<64x128xf32, #tpu.memory_space<vmem>>, vector<8x128xf32>
    %49 = arith.truncf %48 : vector<8x128xf32> to vector<8x128xbf16>
    %50 = arith.index_cast %46 : i32 to index
    %c0_25 = arith.constant 0 : index
    %51 = vector.load %arg4[%50, %c0_25] : memref<1024x128xbf16, #tpu.memory_space<vmem>>, vector<128x128xbf16>
    %cst_26 = arith.constant dense<0.000000e+00> : vector<8x128xf32>
    %52 = tpu.matmul %49, %51, %cst_26 {dimension_numbers = #tpu.dot_dimension_numbers<[1], [0], [0], [1], [0, 0, 1, 1], [], []>} : vector<8x128xbf16>, vector<128x128xbf16>, vector<8x128xf32> -> vector<8x128xf32>
    %53 = arith.addf %42, %52 : vector<8x128xf32>
    %c4_i32 = arith.constant 4 : i32
    %c8_i32_27 = arith.constant 8 : i32
    %54 = arith.muli %c4_i32, %c8_i32_27 : i32
    %55 = tpu.assume_multiple %54, 8 : i32
    %c128_i32_28 = arith.constant 128 : i32
    %56 = arith.muli %c4_i32, %c128_i32_28 : i32
    %57 = tpu.assume_multiple %56, 128 : i32
    %58 = arith.index_cast %55 : i32 to index
    %c0_29 = arith.constant 0 : index
    %59 = vector.load %arg7[%58, %c0_29] : memref<64x128xf32, #tpu.memory_space<vmem>>, vector<8x128xf32>
    %60 = arith.truncf %59 : vector<8x128xf32> to vector<8x128xbf16>
    %61 = arith.index_cast %57 : i32 to index
    %c0_30 = arith.constant 0 : index
    %62 = vector.load %arg4[%61, %c0_30] : memref<1024x128xbf16, #tpu.memory_space<vmem>>, vector<128x128xbf16>
    %cst_31 = arith.constant dense<0.000000e+00> : vector<8x128xf32>
    %63 = tpu.matmul %60, %62, %cst_31 {dimension_numbers = #tpu.dot_dimension_numbers<[1], [0], [0], [1], [0, 0, 1, 1], [], []>} : vector<8x128xbf16>, vector<128x128xbf16>, vector<8x128xf32> -> vector<8x128xf32>
    %64 = arith.addf %53, %63 : vector<8x128xf32>
    %c5_i32 = arith.constant 5 : i32
    %c8_i32_32 = arith.constant 8 : i32
    %65 = arith.muli %c5_i32, %c8_i32_32 : i32
    %66 = tpu.assume_multiple %65, 8 : i32
    %c128_i32_33 = arith.constant 128 : i32
    %67 = arith.muli %c5_i32, %c128_i32_33 : i32
    %68 = tpu.assume_multiple %67, 128 : i32
    %69 = arith.index_cast %66 : i32 to index
    %c0_34 = arith.constant 0 : index
    %70 = vector.load %arg7[%69, %c0_34] : memref<64x128xf32, #tpu.memory_space<vmem>>, vector<8x128xf32>
    %71 = arith.truncf %70 : vector<8x128xf32> to vector<8x128xbf16>
    %72 = arith.index_cast %68 : i32 to index
    %c0_35 = arith.constant 0 : index
    %73 = vector.load %arg4[%72, %c0_35] : memref<1024x128xbf16, #tpu.memory_space<vmem>>, vector<128x128xbf16>
    %cst_36 = arith.constant dense<0.000000e+00> : vector<8x128xf32>
    %74 = tpu.matmul %71, %73, %cst_36 {dimension_numbers = #tpu.dot_dimension_numbers<[1], [0], [0], [1], [0, 0, 1, 1], [], []>} : vector<8x128xbf16>, vector<128x128xbf16>, vector<8x128xf32> -> vector<8x128xf32>
    %75 = arith.addf %64, %74 : vector<8x128xf32>
    %c6_i32 = arith.constant 6 : i32
    %c8_i32_37 = arith.constant 8 : i32
    %76 = arith.muli %c6_i32, %c8_i32_37 : i32
    %77 = tpu.assume_multiple %76, 8 : i32
    %c128_i32_38 = arith.constant 128 : i32
    %78 = arith.muli %c6_i32, %c128_i32_38 : i32
    %79 = tpu.assume_multiple %78, 128 : i32
    %80 = arith.index_cast %77 : i32 to index
    %c0_39 = arith.constant 0 : index
    %81 = vector.load %arg7[%80, %c0_39] : memref<64x128xf32, #tpu.memory_space<vmem>>, vector<8x128xf32>
    %82 = arith.truncf %81 : vector<8x128xf32> to vector<8x128xbf16>
    %83 = arith.index_cast %79 : i32 to index
    %c0_40 = arith.constant 0 : index
    %84 = vector.load %arg4[%83, %c0_40] : memref<1024x128xbf16, #tpu.memory_space<vmem>>, vector<128x128xbf16>
    %cst_41 = arith.constant dense<0.000000e+00> : vector<8x128xf32>
    %85 = tpu.matmul %82, %84, %cst_41 {dimension_numbers = #tpu.dot_dimension_numbers<[1], [0], [0], [1], [0, 0, 1, 1], [], []>} : vector<8x128xbf16>, vector<128x128xbf16>, vector<8x128xf32> -> vector<8x128xf32>
    %86 = arith.addf %75, %85 : vector<8x128xf32>
    %c7_i32 = arith.constant 7 : i32
    %c8_i32_42 = arith.constant 8 : i32
    %87 = arith.muli %c7_i32, %c8_i32_42 : i32
    %88 = tpu.assume_multiple %87, 8 : i32
    %c128_i32_43 = arith.constant 128 : i32
    %89 = arith.muli %c7_i32, %c128_i32_43 : i32
    %90 = tpu.assume_multiple %89, 128 : i32
    %91 = arith.index_cast %88 : i32 to index
    %c0_44 = arith.constant 0 : index
    %92 = vector.load %arg7[%91, %c0_44] : memref<64x128xf32, #tpu.memory_space<vmem>>, vector<8x128xf32>
    %93 = arith.truncf %92 : vector<8x128xf32> to vector<8x128xbf16>
    %94 = arith.index_cast %90 : i32 to index
    %c0_45 = arith.constant 0 : index
    %95 = vector.load %arg4[%94, %c0_45] : memref<1024x128xbf16, #tpu.memory_space<vmem>>, vector<128x128xbf16>
    %cst_46 = arith.constant dense<0.000000e+00> : vector<8x128xf32>
    %96 = tpu.matmul %93, %95, %cst_46 {dimension_numbers = #tpu.dot_dimension_numbers<[1], [0], [0], [1], [0, 0, 1, 1], [], []>} : vector<8x128xbf16>, vector<128x128xbf16>, vector<8x128xf32> -> vector<8x128xf32>
    %97 = arith.addf %86, %96 : vector<8x128xf32>
    %c8_i32_47 = arith.constant 8 : i32
    %c0_48 = arith.constant 0 : index
    %c0_49 = arith.constant 0 : index
    %98 = vector.load %arg5[%c0_48, %c0_49] : memref<1x128xf32, #tpu.memory_space<vmem>>, vector<1x128xf32>
    %99 = vector.broadcast %98 : vector<1x128xf32> to vector<8x128xf32>
    %100 = arith.addf %97, %99 : vector<8x128xf32>
    %c0_50 = arith.constant 0 : index
    %c0_51 = arith.constant 0 : index
    %101 = vector.load %arg6[%c0_50, %c0_51] : memref<8x128xf32, #tpu.memory_space<vmem>>, vector<8x128xf32>
    tpu.vector_store %arg6[%c0_50, %c0_51], %100 {strides = array<i32>} : memref<8x128xf32, #tpu.memory_space<vmem>>, vector<8x128xf32>,
    return
  }
  func.func @transform_0(%arg0: i32) -> (i32, i32) {
    %c0_i32 = arith.constant 0 : i32
    %c0_i32_0 = arith.constant 0 : i32
    return %arg0, %c0_i32 : i32, i32
  }
  func.func @transform_1(%arg0: i32) -> (i32, i32) {
    %c0_i32 = arith.constant 0 : i32
    %c0_i32_0 = arith.constant 0 : i32
    %c0_i32_1 = arith.constant 0 : i32
    return %c0_i32, %c0_i32_0 : i32, i32
  }
  func.func @transform_2(%arg0: i32) -> (i32, i32) {
    %c0_i32 = arith.constant 0 : i32
    %c0_i32_0 = arith.constant 0 : i32
    %c0_i32_1 = arith.constant 0 : i32
    return %c0_i32, %c0_i32_0 : i32, i32
  }
  func.func @transform_3(%arg0: i32) -> (i32, i32) {
    %c0_i32 = arith.constant 0 : i32
    %c0_i32_0 = arith.constant 0 : i32
    %c0_i32_1 = arith.constant 0 : i32
    return %c0_i32, %c0_i32_0 : i32, i32
  }
  func.func @transform_4(%arg0: i32) -> (i32, i32) {
    %c0_i32 = arith.constant 0 : i32
    %c0_i32_0 = arith.constant 0 : i32
    %c0_i32_1 = arith.constant 0 : i32
    return %c0_i32, %c0_i32_0 : i32, i32
  }
  func.func @transform_5(%arg0: i32) -> (i32, i32) {
    %c0_i32 = arith.constant 0 : i32
    %c0_i32_0 = arith.constant 0 : i32
    return %arg0, %c0_i32 : i32, i32
  }
}

</mosaic_0001>

<llo_original>
// kernel: tpu_custom_call.1
$region0: #{tpu_custom_call.1}
  #allocation0 [shape = 'u32[]', space=smem, size = 0x4, offset = 0x4, fixed_abs, tag = 'smem constant byte address 0x4 - core index']
  #allocation1 [shape = 'u32[72,128]{1,0:T(1,128)}', space=vmem, size = 0x9000, scoped, tag = 'internal scratch']
  #allocation2 [shape = 'f32[64,128]{1,0:T(8,128)}', space=vmem, size = 0x8000, scoped, tag = 'scratch operand']
  %s0 = inlined_call_operand.vmem [shape: bf16[64,48], index: 0, kind: input, shape index: {}]
  %s1 = inlined_call_operand.vmem [shape: bf16[48,128], index: 1, kind: input, shape index: {}]
  %s2 = inlined_call_operand.vmem [shape: f32[1,128], index: 2, kind: input, shape index: {}]
  %s3 = inlined_call_operand.hbm [shape: bf16[1024,128], index: 3, kind: input, shape index: {}]
  %s4 = inlined_call_operand.vmem [shape: f32[1,128], index: 4, kind: input, shape index: {}]
  %s5 = inlined_call_operand.hbm [shape: f32[8,128], index: 5, kind: output, shape index: {}]
  %s6 = sld [smem:[#allocation0]]
  $region34: #{tpu_custom_call.1} parent=0
    _
  %s8 = ssub.s32 1, %s6
  %s9 = scalar_select 0, %s8, %s6
  $region1: #{tpu_custom_call.1} parent=0
    #allocation3 [shape = 'u8[262144]{0}', space=vmem, size = 0x40000, scoped, tag = 'input window, operand 3, single buffered']
    #allocation4 [shape = 's32[1]{0}', space=sflag, size = 0x4, scoped, tag = 'scoped memory for tpu_custom_call.1']
    #allocation5 [shape = 's32[1]{0}', space=sflag, size = 0x4, scoped, tag = 'scoped memory for tpu_custom_call.1']
    #allocation6 [shape = 'u8[4096]{0}', space=vmem, size = 0x1000, scoped, tag = 'output window, operand 0, single buffered']
    %10 = vsyncpa [#allocation4], 0
    %11 = vsyncpa [#allocation5], 0
    // Predicated region
    $region2: #{tpu_custom_call.1} parent=1 // pred_check
      _
    $region3: #{tpu_custom_call.1} parent=1 // pred_check_branch
      %13 = sbr.rel (0) target = $region5
    $region4: #{tpu_custom_call.1} parent=1 // pred_region
      _
    $region5: #{tpu_custom_call.1} parent=1 // pred_fallthru
      _
    // Predicated region
    $region6: #{tpu_custom_call.1} parent=1 // pred_check
      _
    $region7: #{tpu_custom_call.1} parent=1 // pred_check_branch
      %15 = sbr.rel (0) target = $region9
    $region8: #{tpu_custom_call.1} parent=1 // pred_region
      _
    $region9: #{tpu_custom_call.1} parent=1 // pred_fallthru
      _
    // Predicated region
    $region10: #{tpu_custom_call.1} parent=1 // pred_check
      _
    $region11: #{tpu_custom_call.1} parent=1 // pred_check_branch
      %17 = sbr.rel (0) target = $region13
    $region12: #{tpu_custom_call.1} parent=1 // pred_region
      _
    $region13: #{tpu_custom_call.1} parent=1 // pred_fallthru
      _
    // Predicated region
    $region14: #{tpu_custom_call.1} parent=1 // pred_check
      _
    $region15: #{tpu_custom_call.1} parent=1 // pred_check_branch
      %19 = sbr.rel (0) target = $region17
    $region16: #{tpu_custom_call.1} parent=1 // pred_region
      %21 = vsyncadd [#allocation4], 0
      %s22 = sshll.u32 %s3, 4
      %s23 = int_to_ptr.hbm [resolvable:$true] %s22
      %s24 = sshll.u32 [#allocation3], 4
      %s25 = int_to_ptr.vmem [resolvable:$true] %s24
      %30 = dma.hbm_to_vmem [thread:$0]  %s23, 8192, %s25, [#allocation4], 64, 64, 4
    $region17: #{tpu_custom_call.1} parent=1 // pred_fallthru
      _
    // Predicated region
    $region18: #{tpu_custom_call.1} parent=1 // pred_check
      _
    $region19: #{tpu_custom_call.1} parent=1 // pred_check_branch
      %32 = sbr.rel (0) target = $region21
    $region20: #{tpu_custom_call.1} parent=1 // pred_region
      _
    $region21: #{tpu_custom_call.1} parent=1 // pred_fallthru
      _
    // Predicated region
    $region22: #{tpu_custom_call.1} parent=1 // pred_check
      _
    $region23: #{tpu_custom_call.1} parent=1 // pred_check_branch
      %34 = sbr.rel (0) target = $region25
    $region24: #{tpu_custom_call.1} parent=1 // pred_region
      %36 = dma.done [#allocation4], 8192
    $region25: #{tpu_custom_call.1} parent=1 // pred_fallthru
      _
    %v38 = vld [vmem:[%s0] sm:$0xf]
    %v39 = vld [vmem:[%s0 + $0x4] sm:$0xf]
    %v40 = vld [vmem:[%s0 + $0x8] sm:$0xf]
    %v41 = vld [vmem:[%s0 + $0xc] sm:$0xf]
    %v42 = vld [vmem:[%s0 + $0x10] sm:$0xf]
    %v43 = vld [vmem:[%s0 + $0x14] sm:$0xf]
    %v44 = vld [vmem:[%s0 + $0x18] sm:$0xf]
    %v45 = vld [vmem:[%s0 + $0x1c] sm:$0xf]
    %v46 = vld [vmem:[%s1] sm:$0xf]
    %v47 = vld [vmem:[%s1 + $0x4] sm:$0xf]
    %v48 = vld [vmem:[%s1 + $0x8] sm:$0xf]
    %v49 = vld [vmem:[%s1 + $0xc] sm:$0xf]
    %v50 = vld [vmem:[%s1 + $0x10] sm:$0xf]
    %v51 = vld [vmem:[%s1 + $0x14] sm:$0xf]
    %v52 = vld [vmem:[%s2] sm:$0x1]
    %v54 = vperm.slane %v52, 0
    %v64 = vunpack.c.l.b16 %v38
    %v65 = vunpack.c.l.b16 %v39
    %v66 = vunpack.c.l.b16 %v40
    %v67 = vunpack.c.l.b16 %v41
    %v68 = vunpack.c.l.b16 %v42
    %v69 = vunpack.c.l.b16 %v43
    %v70 = vunpack.c.l.b16 %v44
    %v71 = vunpack.c.l.b16 %v45
    %v72 = vpack.c.b16 %v65, %v64
    %v73 = vpack.c.b16 %v67, %v66
    %v74 = vpack.c.b16 %v69, %v68
    %v75 = vpack.c.b16 %v71, %v70
    %v82 = vunpack.c.l.b16 %v46
    %v83 = vunpack.c.l.b16 %v47
    %v84 = vunpack.c.l.b16 %v48
    %v85 = vunpack.c.l.b16 %v49
    %v86 = vunpack.c.l.b16 %v50
    %v87 = vunpack.c.l.b16 %v51
    %v88 = vpack.c.b16 %v83, %v82
    %v89 = vpack.c.b16 %v85, %v84
    %v90 = vpack.c.b16 %v87, %v86
    %vm94 = vcmask 392192
    %v96 = vsel %vm94, %v72, 0
    %v99 = vsel %vm94, %v73, 0
    %v102 = vsel %vm94, %v74, 0
    %v105 = vsel %vm94, %v75, 0
    %107 = vmatpush.bf16.msra.mxu0 0
    %108 = vmatpush.bf16.msra.mxu0 0
    %109 = vmatpush.bf16.msra.mxu0 0
    %110 = vmatpush.bf16.msra.mxu0 0
    %111 = vmatpush.bf16.msra.mxu0 0
    %112 = vmatpush.bf16.msra.mxu0 %v90
    %113 = vmatpush.bf16.msra.mxu0 %v89
    %114 = vmatpush.bf16.msra.mxu0 %v88
    %115 = vmatmul.bf16.gmra.mxu0 %v96
    %v116 = vpop.f32.mrf.mxu0
    %v117 = vadd.f32 %v54, %v116
    %v118 = vpop.f32.mrf.mxu0
    %v119 = vadd.f32 %v54, %v118
    %120 = vmatmul.bf16.gmra.mxu0 %v99
    %v121 = vpop.f32.mrf.mxu0
    %v122 = vadd.f32 %v54, %v121
    %v123 = vpop.f32.mrf.mxu0
    %v124 = vadd.f32 %v54, %v123
    %125 = vmatmul.bf16.gmra.mxu0 %v102
    %v126 = vpop.f32.mrf.mxu0
    %v127 = vadd.f32 %v54, %v126
    %v128 = vpop.f32.mrf.mxu0
    %v129 = vadd.f32 %v54, %v128
    %130 = vmatmul.bf16.gmra.mxu0 %v105
    %v131 = vpop.f32.mrf.mxu0
    %v132 = vadd.f32 %v54, %v131
    %v133 = vpop.f32.mrf.mxu0
    %v134 = vadd.f32 %v54, %v133
    %135 = vdwg.mxu0
    %v136 = vmax.f32 %v117, 0.0
    %v137 = vmax.f32 %v119, 0.0
    %v138 = vmax.f32 %v122, 0.0
    %v139 = vmax.f32 %v124, 0.0
    %v140 = vmax.f32 %v127, 0.0
    %v141 = vmax.f32 %v129, 0.0
    %v142 = vmax.f32 %v132, 0.0
    %v143 = vmax.f32 %v134, 0.0
    %144 = vst [vmem:[#allocation2] sm:$0xff] %v136
    %145 = vst [vmem:[#allocation2 + $0x8] sm:$0xff] %v137
    %146 = vst [vmem:[#allocation2 + $0x10] sm:$0xff] %v138
    %147 = vst [vmem:[#allocation2 + $0x18] sm:$0xff] %v139
    %148 = vst [vmem:[#allocation2 + $0x20] sm:$0xff] %v140
    %149 = vst [vmem:[#allocation2 + $0x28] sm:$0xff] %v141
    %150 = vst [vmem:[#allocation2 + $0x30] sm:$0xff] %v142
    %151 = vst [vmem:[#allocation2 + $0x38] sm:$0xff] %v143
    %v152 = vld [vmem:[#allocation2] sm:$0xff]
    %v153 = vpack.c.bf16 %v152, %v152
    %v154 = vld [vmem:[#allocation3] sm:$0xf]
    %v155 = vld [vmem:[#allocation3 + $0x4] sm:$0xf]
    %v156 = vld [vmem:[#allocation3 + $0x8] sm:$0xf]
    %v157 = vld [vmem:[#allocation3 + $0xc] sm:$0xf]
    %v158 = vld [vmem:[#allocation3 + $0x10] sm:$0xf]
    %v159 = vld [vmem:[#allocation3 + $0x14] sm:$0xf]
    %v160 = vld [vmem:[#allocation3 + $0x18] sm:$0xf]
    %v161 = vld [vmem:[#allocation3 + $0x1c] sm:$0xf]
    %v162 = vld [vmem:[#allocation3 + $0x20] sm:$0xf]
    %v163 = vld [vmem:[#allocation3 + $0x24] sm:$0xf]
    %v164 = vld [vmem:[#allocation3 + $0x28] sm:$0xf]
    %v165 = vld [vmem:[#allocation3 + $0x2c] sm:$0xf]
    %v166 = vld [vmem:[#allocation3 + $0x30] sm:$0xf]
    %v167 = vld [vmem:[#allocation3 + $0x34] sm:$0xf]
    %v168 = vld [vmem:[#allocation3 + $0x38] sm:$0xf]
    %v169 = vld [vmem:[#allocation3 + $0x3c] sm:$0xf]
    %s170 = scalar_lea.vmem [#allocation2], 8
    %v171 = vld [vmem:[%s170] sm:$0xff]
    %v172 = vpack.c.bf16 %v171, %v171
    %s173 = scalar_lea.vmem [#allocation3], 64
    %v174 = vld [vmem:[%s173] sm:$0xf]
    %v175 = vld [vmem:[%s173 + $0x4] sm:$0xf]
    %v176 = vld [vmem:[%s173 + $0x8] sm:$0xf]
    %v177 = vld [vmem:[%s173 + $0xc] sm:$0xf]
    %v178 = vld [vmem:[%s173 + $0x10] sm:$0xf]
    %v179 = vld [vmem:[%s173 + $0x14] sm:$0xf]
    %v180 = vld [vmem:[%s173 + $0x18] sm:$0xf]
    %v181 = vld [vmem:[%s173 + $0x1c] sm:$0xf]
    %v182 = vld [vmem:[%s173 + $0x20] sm:$0xf]
    %v183 = vld [vmem:[%s173 + $0x24] sm:$0xf]
    %v184 = vld [vmem:[%s173 + $0x28] sm:$0xf]
    %v185 = vld [vmem:[%s173 + $0x2c] sm:$0xf]
    %v186 = vld [vmem:[%s173 + $0x30] sm:$0xf]
    %v187 = vld [vmem:[%s173 + $0x34] sm:$0xf]
    %v188 = vld [vmem:[%s173 + $0x38] sm:$0xf]
    %v189 = vld [vmem:[%s173 + $0x3c] sm:$0xf]
    %v206 = vunpack.c.l.b16 %v174
    %v207 = vunpack.c.l.b16 %v175
    %v208 = vunpack.c.l.b16 %v176
    %v209 = vunpack.c.l.b16 %v177
    %v210 = vunpack.c.l.b16 %v178
    %v211 = vunpack.c.l.b16 %v179
    %v212 = vunpack.c.l.b16 %v180
    %v213 = vunpack.c.l.b16 %v181
    %v214 = vunpack.c.l.b16 %v182
    %v215 = vunpack.c.l.b16 %v183
    %v216 = vunpack.c.l.b16 %v184
    %v217 = vunpack.c.l.b16 %v185
    %v218 = vunpack.c.l.b16 %v186
    %v219 = vunpack.c.l.b16 %v187
    %v220 = vunpack.c.l.b16 %v188
    %v221 = vunpack.c.l.b16 %v189
    %v222 = vpack.c.b16 %v207, %v206
    %v223 = vpack.c.b16 %v209, %v208
    %v224 = vpack.c.b16 %v211, %v210
    %v225 = vpack.c.b16 %v213, %v212
    %v226 = vpack.c.b16 %v215, %v214
    %v227 = vpack.c.b16 %v217, %v216
    %v228 = vpack.c.b16 %v219, %v218
    %v229 = vpack.c.b16 %v221, %v220
    %238 = vmatpush.bf16.msra.mxu0 %v229
    %239 = vmatpush.bf16.msra.mxu0 %v228
    %240 = vmatpush.bf16.msra.mxu0 %v227
    %241 = vmatpush.bf16.msra.mxu0 %v226
    %242 = vmatpush.bf16.msra.mxu0 %v225
    %243 = vmatpush.bf16.msra.mxu0 %v224
    %244 = vmatpush.bf16.msra.mxu0 %v223
    %245 = vmatpush.bf16.msra.mxu0 %v222
    %246 = vmatmul.bf16.gmra.mxu0 %v172
    %v247 = vpop.f32.mrf.mxu0
    %v248 = vadd.f32 0.0, %v247
    %v249 = vpop.f32.mrf.mxu0
    %250 = vdwg.mxu0
    %v267 = vunpack.c.l.b16 %v154
    %v268 = vunpack.c.l.b16 %v155
    %v269 = vunpack.c.l.b16 %v156
    %v270 = vunpack.c.l.b16 %v157
    %v271 = vunpack.c.l.b16 %v158
    %v272 = vunpack.c.l.b16 %v159
    %v273 = vunpack.c.l.b16 %v160
    %v274 = vunpack.c.l.b16 %v161
    %v275 = vunpack.c.l.b16 %v162
    %v276 = vunpack.c.l.b16 %v163
    %v277 = vunpack.c.l.b16 %v164
    %v278 = vunpack.c.l.b16 %v165
    %v279 = vunpack.c.l.b16 %v166
    %v280 = vunpack.c.l.b16 %v167
    %v281 = vunpack.c.l.b16 %v168
    %v282 = vunpack.c.l.b16 %v169
    %v283 = vpack.c.b16 %v268, %v267
    %v284 = vpack.c.b16 %v270, %v269
    %v285 = vpack.c.b16 %v272, %v271
    %v286 = vpack.c.b16 %v274, %v273
    %v287 = vpack.c.b16 %v276, %v275
    %v288 = vpack.c.b16 %v278, %v277
    %v289 = vpack.c.b16 %v280, %v279
    %v290 = vpack.c.b16 %v282, %v281
    %299 = vmatpush.bf16.msra.mxu0 %v290
    %300 = vmatpush.bf16.msra.mxu0 %v289
    %301 = vmatpush.bf16.msra.mxu0 %v288
    %302 = vmatpush.bf16.msra.mxu0 %v287
    %303 = vmatpush.bf16.msra.mxu0 %v286
    %304 = vmatpush.bf16.msra.mxu0 %v285
    %305 = vmatpush.bf16.msra.mxu0 %v284
    %306 = vmatpush.bf16.msra.mxu0 %v283
    %307 = vmatmul.bf16.gmra.mxu0 %v153
    %v308 = vpop.f32.mrf.mxu0
    %v309 = vadd.f32 %v248, %v308
    %v310 = vpop.f32.mrf.mxu0
    %311 = vdwg.mxu0
    %s312 = scalar_lea.vmem [#allocation2], 16
    %v313 = vld [vmem:[%s312] sm:$0xff]
    %v314 = vpack.c.bf16 %v313, %v313
    %s315 = scalar_lea.vmem [#allocation3], 128
    %v316 = vld [vmem:[%s315] sm:$0xf]
    %v317 = vld [vmem:[%s315 + $0x4] sm:$0xf]
    %v318 = vld [vmem:[%s315 + $0x8] sm:$0xf]
    %v319 = vld [vmem:[%s315 + $0xc] sm:$0xf]
    %v320 = vld [vmem:[%s315 + $0x10] sm:$0xf]
    %v321 = vld [vmem:[%s315 + $0x14] sm:$0xf]
    %v322 = vld [vmem:[%s315 + $0x18] sm:$0xf]
    %v323 = vld [vmem:[%s315 + $0x1c] sm:$0xf]
    %v324 = vld [vmem:[%s315 + $0x20] sm:$0xf]
    %v325 = vld [vmem:[%s315 + $0x24] sm:$0xf]
    %v326 = vld [vmem:[%s315 + $0x28] sm:$0xf]
    %v327 = vld [vmem:[%s315 + $0x2c] sm:$0xf]
    %v328 = vld [vmem:[%s315 + $0x30] sm:$0xf]
    %v329 = vld [vmem:[%s315 + $0x34] sm:$0xf]
    %v330 = vld [vmem:[%s315 + $0x38] sm:$0xf]
    %v331 = vld [vmem:[%s315 + $0x3c] sm:$0xf]
    %v348 = vunpack.c.l.b16 %v316
    %v349 = vunpack.c.l.b16 %v317
    %v350 = vunpack.c.l.b16 %v318
    %v351 = vunpack.c.l.b16 %v319
    %v352 = vunpack.c.l.b16 %v320
    %v353 = vunpack.c.l.b16 %v321
    %v354 = vunpack.c.l.b16 %v322
    %v355 = vunpack.c.l.b16 %v323
    %v356 = vunpack.c.l.b16 %v324
    %v357 = vunpack.c.l.b16 %v325
    %v358 = vunpack.c.l.b16 %v326
    %v359 = vunpack.c.l.b16 %v327
    %v360 = vunpack.c.l.b16 %v328
    %v361 = vunpack.c.l.b16 %v329
    %v362 = vunpack.c.l.b16 %v330
    %v363 = vunpack.c.l.b16 %v331
    %v364 = vpack.c.b16 %v349, %v348
    %v365 = vpack.c.b16 %v351, %v350
    %v366 = vpack.c.b16 %v353, %v352
    %v367 = vpack.c.b16 %v355, %v354
    %v368 = vpack.c.b16 %v357, %v356
    %v369 = vpack.c.b16 %v359, %v358
    %v370 = vpack.c.b16 %v361, %v360
    %v371 = vpack.c.b16 %v363, %v362
    %380 = vmatpush.bf16.msra.mxu0 %v371
    %381 = vmatpush.bf16.msra.mxu0 %v370
    %382 = vmatpush.bf16.msra.mxu0 %v369
    %383 = vmatpush.bf16.msra.mxu0 %v368
    %384 = vmatpush.bf16.msra.mxu0 %v367
    %385 = vmatpush.bf16.msra.mxu0 %v366
    %386 = vmatpush.bf16.msra.mxu0 %v365
    %387 = vmatpush.bf16.msra.mxu0 %v364
    %388 = vmatmul.bf16.gmra.mxu0 %v314
    %v389 = vpop.f32.mrf.mxu0
    %v390 = vadd.f32 0.0, %v389
    %v391 = vpop.f32.mrf.mxu0
    %392 = vdwg.mxu0
    %v393 = vadd.f32 %v309, %v390
    %s394 = scalar_lea.vmem [#allocation2], 24
    %v395 = vld [vmem:[%s394] sm:$0xff]
    %v396 = vpack.c.bf16 %v395, %v395
    %s397 = scalar_lea.vmem [#allocation3], 192
    %v398 = vld [vmem:[%s397] sm:$0xf]
    %v399 = vld [vmem:[%s397 + $0x4] sm:$0xf]
    %v400 = vld [vmem:[%s397 + $0x8] sm:$0xf]
    %v401 = vld [vmem:[%s397 + $0xc] sm:$0xf]
    %v402 = vld [vmem:[%s397 + $0x10] sm:$0xf]
    %v403 = vld [vmem:[%s397 + $0x14] sm:$0xf]
    %v404 = vld [vmem:[%s397 + $0x18] sm:$0xf]
    %v405 = vld [vmem:[%s397 + $0x1c] sm:$0xf]
    %v406 = vld [vmem:[%s397 + $0x20] sm:$0xf]
    %v407 = vld [vmem:[%s397 + $0x24] sm:$0xf]
    %v408 = vld [vmem:[%s397 + $0x28] sm:$0xf]
    %v409 = vld [vmem:[%s397 + $0x2c] sm:$0xf]
    %v410 = vld [vmem:[%s397 + $0x30] sm:$0xf]
    %v411 = vld [vmem:[%s397 + $0x34] sm:$0xf]
    %v412 = vld [vmem:[%s397 + $0x38] sm:$0xf]
    %v413 = vld [vmem:[%s397 + $0x3c] sm:$0xf]
    %v430 = vunpack.c.l.b16 %v398
    %v431 = vunpack.c.l.b16 %v399
    %v432 = vunpack.c.l.b16 %v400
    %v433 = vunpack.c.l.b16 %v401
    %v434 = vunpack.c.l.b16 %v402
    %v435 = vunpack.c.l.b16 %v403
    %v436 = vunpack.c.l.b16 %v404
    %v437 = vunpack.c.l.b16 %v405
    %v438 = vunpack.c.l.b16 %v406
    %v439 = vunpack.c.l.b16 %v407
    %v440 = vunpack.c.l.b16 %v408
    %v441 = vunpack.c.l.b16 %v409
    %v442 = vunpack.c.l.b16 %v410
    %v443 = vunpack.c.l.b16 %v411
    %v444 = vunpack.c.l.b16 %v412
    %v445 = vunpack.c.l.b16 %v413
    %v446 = vpack.c.b16 %v431, %v430
    %v447 = vpack.c.b16 %v433, %v432
    %v448 = vpack.c.b16 %v435, %v434
    %v449 = vpack.c.b16 %v437, %v436
    %v450 = vpack.c.b16 %v439, %v438
    %v451 = vpack.c.b16 %v441, %v440
    %v452 = vpack.c.b16 %v443, %v442
    %v453 = vpack.c.b16 %v445, %v444
    %462 = vmatpush.bf16.msra.mxu0 %v453
    %463 = vmatpush.bf16.msra.mxu0 %v452
    %464 = vmatpush.bf16.msra.mxu0 %v451
    %465 = vmatpush.bf16.msra.mxu0 %v450
    %466 = vmatpush.bf16.msra.mxu0 %v449
    %467 = vmatpush.bf16.msra.mxu0 %v448
    %468 = vmatpush.bf16.msra.mxu0 %v447
    %469 = vmatpush.bf16.msra.mxu0 %v446
    %470 = vmatmul.bf16.gmra.mxu0 %v396
    %v471 = vpop.f32.mrf.mxu0
    %v472 = vadd.f32 0.0, %v471
    %v473 = vpop.f32.mrf.mxu0
    %474 = vdwg.mxu0
    %v475 = vadd.f32 %v393, %v472
    %s476 = scalar_lea.vmem [#allocation2], 32
    %v477 = vld [vmem:[%s476] sm:$0xff]
    %v478 = vpack.c.bf16 %v477, %v477
    %s479 = scalar_lea.vmem [#allocation3], 256
    %v480 = vld [vmem:[%s479] sm:$0xf]
    %v481 = vld [vmem:[%s479 + $0x4] sm:$0xf]
    %v482 = vld [vmem:[%s479 + $0x8] sm:$0xf]
    %v483 = vld [vmem:[%s479 + $0xc] sm:$0xf]
    %v484 = vld [vmem:[%s479 + $0x10] sm:$0xf]
    %v485 = vld [vmem:[%s479 + $0x14] sm:$0xf]
    %v486 = vld [vmem:[%s479 + $0x18] sm:$0xf]
    %v487 = vld [vmem:[%s479 + $0x1c] sm:$0xf]
    %v488 = vld [vmem:[%s479 + $0x20] sm:$0xf]
    %v489 = vld [vmem:[%s479 + $0x24] sm:$0xf]
    %v490 = vld [vmem:[%s479 + $0x28] sm:$0xf]
    %v491 = vld [vmem:[%s479 + $0x2c] sm:$0xf]
    %v492 = vld [vmem:[%s479 + $0x30] sm:$0xf]
    %v493 = vld [vmem:[%s479 + $0x34] sm:$0xf]
    %v494 = vld [vmem:[%s479 + $0x38] sm:$0xf]
    %v495 = vld [vmem:[%s479 + $0x3c] sm:$0xf]
    %v512 = vunpack.c.l.b16 %v480
    %v513 = vunpack.c.l.b16 %v481
    %v514 = vunpack.c.l.b16 %v482
    %v515 = vunpack.c.l.b16 %v483
    %v516 = vunpack.c.l.b16 %v484
    %v517 = vunpack.c.l.b16 %v485
    %v518 = vunpack.c.l.b16 %v486
    %v519 = vunpack.c.l.b16 %v487
    %v520 = vunpack.c.l.b16 %v488
    %v521 = vunpack.c.l.b16 %v489
    %v522 = vunpack.c.l.b16 %v490
    %v523 = vunpack.c.l.b16 %v491
    %v524 = vunpack.c.l.b16 %v492
    %v525 = vunpack.c.l.b16 %v493
    %v526 = vunpack.c.l.b16 %v494
    %v527 = vunpack.c.l.b16 %v495
    %v528 = vpack.c.b16 %v513, %v512
    %v529 = vpack.c.b16 %v515, %v514
    %v530 = vpack.c.b16 %v517, %v516
    %v531 = vpack.c.b16 %v519, %v518
    %v532 = vpack.c.b16 %v521, %v520
    %v533 = vpack.c.b16 %v523, %v522
    %v534 = vpack.c.b16 %v525, %v524
    %v535 = vpack.c.b16 %v527, %v526
    %544 = vmatpush.bf16.msra.mxu0 %v535
    %545 = vmatpush.bf16.msra.mxu0 %v534
    %546 = vmatpush.bf16.msra.mxu0 %v533
    %547 = vmatpush.bf16.msra.mxu0 %v532
    %548 = vmatpush.bf16.msra.mxu0 %v531
    %549 = vmatpush.bf16.msra.mxu0 %v530
    %550 = vmatpush.bf16.msra.mxu0 %v529
    %551 = vmatpush.bf16.msra.mxu0 %v528
    %552 = vmatmul.bf16.gmra.mxu0 %v478
    %v553 = vpop.f32.mrf.mxu0
    %v554 = vadd.f32 0.0, %v553
    %v555 = vpop.f32.mrf.mxu0
    %556 = vdwg.mxu0
    %v557 = vadd.f32 %v475, %v554
    %s558 = scalar_lea.vmem [#allocation2], 40
    %v559 = vld [vmem:[%s558] sm:$0xff]
    %v560 = vpack.c.bf16 %v559, %v559
    %s561 = scalar_lea.vmem [#allocation3], 320
    %v562 = vld [vmem:[%s561] sm:$0xf]
    %v563 = vld [vmem:[%s561 + $0x4] sm:$0xf]
    %v564 = vld [vmem:[%s561 + $0x8] sm:$0xf]
    %v565 = vld [vmem:[%s561 + $0xc] sm:$0xf]
    %v566 = vld [vmem:[%s561 + $0x10] sm:$0xf]
    %v567 = vld [vmem:[%s561 + $0x14] sm:$0xf]
    %v568 = vld [vmem:[%s561 + $0x18] sm:$0xf]
    %v569 = vld [vmem:[%s561 + $0x1c] sm:$0xf]
    %v570 = vld [vmem:[%s561 + $0x20] sm:$0xf]
    %v571 = vld [vmem:[%s561 + $0x24] sm:$0xf]
    %v572 = vld [vmem:[%s561 + $0x28] sm:$0xf]
    %v573 = vld [vmem:[%s561 + $0x2c] sm:$0xf]
    %v574 = vld [vmem:[%s561 + $0x30] sm:$0xf]
    %v575 = vld [vmem:[%s561 + $0x34] sm:$0xf]
    %v576 = vld [vmem:[%s561 + $0x38] sm:$0xf]
    %v577 = vld [vmem:[%s561 + $0x3c] sm:$0xf]
    %v594 = vunpack.c.l.b16 %v562
    %v595 = vunpack.c.l.b16 %v563
    %v596 = vunpack.c.l.b16 %v564
    %v597 = vunpack.c.l.b16 %v565
    %v598 = vunpack.c.l.b16 %v566
    %v599 = vunpack.c.l.b16 %v567
    %v600 = vunpack.c.l.b16 %v568
    %v601 = vunpack.c.l.b16 %v569
    %v602 = vunpack.c.l.b16 %v570
    %v603 = vunpack.c.l.b16 %v571
    %v604 = vunpack.c.l.b16 %v572
    %v605 = vunpack.c.l.b16 %v573
    %v606 = vunpack.c.l.b16 %v574
    %v607 = vunpack.c.l.b16 %v575
    %v608 = vunpack.c.l.b16 %v576
    %v609 = vunpack.c.l.b16 %v577
    %v610 = vpack.c.b16 %v595, %v594
    %v611 = vpack.c.b16 %v597, %v596
    %v612 = vpack.c.b16 %v599, %v598
    %v613 = vpack.c.b16 %v601, %v600
    %v614 = vpack.c.b16 %v603, %v602
    %v615 = vpack.c.b16 %v605, %v604
    %v616 = vpack.c.b16 %v607, %v606
    %v617 = vpack.c.b16 %v609, %v608
    %626 = vmatpush.bf16.msra.mxu0 %v617
    %627 = vmatpush.bf16.msra.mxu0 %v616
    %628 = vmatpush.bf16.msra.mxu0 %v615
    %629 = vmatpush.bf16.msra.mxu0 %v614
    %630 = vmatpush.bf16.msra.mxu0 %v613
    %631 = vmatpush.bf16.msra.mxu0 %v612
    %632 = vmatpush.bf16.msra.mxu0 %v611
    %633 = vmatpush.bf16.msra.mxu0 %v610
    %634 = vmatmul.bf16.gmra.mxu0 %v560
    %v635 = vpop.f32.mrf.mxu0
    %v636 = vadd.f32 0.0, %v635
    %v637 = vpop.f32.mrf.mxu0
    %638 = vdwg.mxu0
    %v639 = vadd.f32 %v557, %v636
    %s640 = scalar_lea.vmem [#allocation2], 48
    %v641 = vld [vmem:[%s640] sm:$0xff]
    %v642 = vpack.c.bf16 %v641, %v641
    %s643 = scalar_lea.vmem [#allocation3], 384
    %v644 = vld [vmem:[%s643] sm:$0xf]
    %v645 = vld [vmem:[%s643 + $0x4] sm:$0xf]
    %v646 = vld [vmem:[%s643 + $0x8] sm:$0xf]
    %v647 = vld [vmem:[%s643 + $0xc] sm:$0xf]
    %v648 = vld [vmem:[%s643 + $0x10] sm:$0xf]
    %v649 = vld [vmem:[%s643 + $0x14] sm:$0xf]
    %v650 = vld [vmem:[%s643 + $0x18] sm:$0xf]
    %v651 = vld [vmem:[%s643 + $0x1c] sm:$0xf]
    %v652 = vld [vmem:[%s643 + $0x20] sm:$0xf]
    %v653 = vld [vmem:[%s643 + $0x24] sm:$0xf]
    %v654 = vld [vmem:[%s643 + $0x28] sm:$0xf]
    %v655 = vld [vmem:[%s643 + $0x2c] sm:$0xf]
    %v656 = vld [vmem:[%s643 + $0x30] sm:$0xf]
    %v657 = vld [vmem:[%s643 + $0x34] sm:$0xf]
    %v658 = vld [vmem:[%s643 + $0x38] sm:$0xf]
    %v659 = vld [vmem:[%s643 + $0x3c] sm:$0xf]
    %v676 = vunpack.c.l.b16 %v644
    %v677 = vunpack.c.l.b16 %v645
    %v678 = vunpack.c.l.b16 %v646
    %v679 = vunpack.c.l.b16 %v647
    %v680 = vunpack.c.l.b16 %v648
    %v681 = vunpack.c.l.b16 %v649
    %v682 = vunpack.c.l.b16 %v650
    %v683 = vunpack.c.l.b16 %v651
    %v684 = vunpack.c.l.b16 %v652
    %v685 = vunpack.c.l.b16 %v653
    %v686 = vunpack.c.l.b16 %v654
    %v687 = vunpack.c.l.b16 %v655
    %v688 = vunpack.c.l.b16 %v656
    %v689 = vunpack.c.l.b16 %v657
    %v690 = vunpack.c.l.b16 %v658
    %v691 = vunpack.c.l.b16 %v659
    %v692 = vpack.c.b16 %v677, %v676
    %v693 = vpack.c.b16 %v679, %v678
    %v694 = vpack.c.b16 %v681, %v680
    %v695 = vpack.c.b16 %v683, %v682
    %v696 = vpack.c.b16 %v685, %v684
    %v697 = vpack.c.b16 %v687, %v686
    %v698 = vpack.c.b16 %v689, %v688
    %v699 = vpack.c.b16 %v691, %v690
    %708 = vmatpush.bf16.msra.mxu0 %v699
    %709 = vmatpush.bf16.msra.mxu0 %v698
    %710 = vmatpush.bf16.msra.mxu0 %v697
    %711 = vmatpush.bf16.msra.mxu0 %v696
    %712 = vmatpush.bf16.msra.mxu0 %v695
    %713 = vmatpush.bf16.msra.mxu0 %v694
    %714 = vmatpush.bf16.msra.mxu0 %v693
    %715 = vmatpush.bf16.msra.mxu0 %v692
    %716 = vmatmul.bf16.gmra.mxu0 %v642
    %v717 = vpop.f32.mrf.mxu0
    %v718 = vadd.f32 0.0, %v717
    %v719 = vpop.f32.mrf.mxu0
    %720 = vdwg.mxu0
    %v721 = vadd.f32 %v639, %v718
    %s722 = scalar_lea.vmem [#allocation2], 56
    %v723 = vld [vmem:[%s722] sm:$0xff]
    %v724 = vpack.c.bf16 %v723, %v723
    %s725 = scalar_lea.vmem [#allocation3], 448
    %v726 = vld [vmem:[%s725] sm:$0xf]
    %v727 = vld [vmem:[%s725 + $0x4] sm:$0xf]
    %v728 = vld [vmem:[%s725 + $0x8] sm:$0xf]
    %v729 = vld [vmem:[%s725 + $0xc] sm:$0xf]
    %v730 = vld [vmem:[%s725 + $0x10] sm:$0xf]
    %v731 = vld [vmem:[%s725 + $0x14] sm:$0xf]
    %v732 = vld [vmem:[%s725 + $0x18] sm:$0xf]
    %v733 = vld [vmem:[%s725 + $0x1c] sm:$0xf]
    %v734 = vld [vmem:[%s725 + $0x20] sm:$0xf]
    %v735 = vld [vmem:[%s725 + $0x24] sm:$0xf]
    %v736 = vld [vmem:[%s725 + $0x28] sm:$0xf]
    %v737 = vld [vmem:[%s725 + $0x2c] sm:$0xf]
    %v738 = vld [vmem:[%s725 + $0x30] sm:$0xf]
    %v739 = vld [vmem:[%s725 + $0x34] sm:$0xf]
    %v740 = vld [vmem:[%s725 + $0x38] sm:$0xf]
    %v741 = vld [vmem:[%s725 + $0x3c] sm:$0xf]
    %v758 = vunpack.c.l.b16 %v726
    %v759 = vunpack.c.l.b16 %v727
    %v760 = vunpack.c.l.b16 %v728
    %v761 = vunpack.c.l.b16 %v729
    %v762 = vunpack.c.l.b16 %v730
    %v763 = vunpack.c.l.b16 %v731
    %v764 = vunpack.c.l.b16 %v732
    %v765 = vunpack.c.l.b16 %v733
    %v766 = vunpack.c.l.b16 %v734
    %v767 = vunpack.c.l.b16 %v735
    %v768 = vunpack.c.l.b16 %v736
    %v769 = vunpack.c.l.b16 %v737
    %v770 = vunpack.c.l.b16 %v738
    %v771 = vunpack.c.l.b16 %v739
    %v772 = vunpack.c.l.b16 %v740
    %v773 = vunpack.c.l.b16 %v741
    %v774 = vpack.c.b16 %v759, %v758
    %v775 = vpack.c.b16 %v761, %v760
    %v776 = vpack.c.b16 %v763, %v762
    %v777 = vpack.c.b16 %v765, %v764
    %v778 = vpack.c.b16 %v767, %v766
    %v779 = vpack.c.b16 %v769, %v768
    %v780 = vpack.c.b16 %v771, %v770
    %v781 = vpack.c.b16 %v773, %v772
    %790 = vmatpush.bf16.msra.mxu0 %v781
    %791 = vmatpush.bf16.msra.mxu0 %v780
    %792 = vmatpush.bf16.msra.mxu0 %v779
    %793 = vmatpush.bf16.msra.mxu0 %v778
    %794 = vmatpush.bf16.msra.mxu0 %v777
    %795 = vmatpush.bf16.msra.mxu0 %v776
    %796 = vmatpush.bf16.msra.mxu0 %v775
    %797 = vmatpush.bf16.msra.mxu0 %v774
    %798 = vmatmul.bf16.gmra.mxu0 %v724
    %v799 = vpop.f32.mrf.mxu0
    %v800 = vadd.f32 0.0, %v799
    %v801 = vpop.f32.mrf.mxu0
    %802 = vdwg.mxu0
    %v803 = vadd.f32 %v721, %v800
    %v804 = vld [vmem:[%s4] sm:$0x1]
    %v806 = vperm.slane %v804, 0
    %v808 = vadd.f32 %v803, %v806
    %809 = vst [vmem:[#allocation6] sm:$0xff] %v808
    // Predicated region
    $region26: #{tpu_custom_call.1} parent=1 // pred_check
      _
    $region27: #{tpu_custom_call.1} parent=1 // pred_check_branch
      %811 = sbr.rel (0) target = $region29
    $region28: #{tpu_custom_call.1} parent=1 // pred_region
      %813 = vsyncadd [#allocation5], 0
      %s815 = sshll.u32 [#allocation6], 4
      %s816 = int_to_ptr.vmem [resolvable:$true] %s815
      %s817 = sshll.u32 %s5, 4
      %s818 = int_to_ptr.hbm [resolvable:$true] %s817
      %820 = dma.vmem_to_hbm [thread:$0]  %s816, 128, %s818, [#allocation5]
    $region29: #{tpu_custom_call.1} parent=1 // pred_fallthru
      _
    // Predicated region
    $region30: #{tpu_custom_call.1} parent=1 // pred_check
      _
    $region31: #{tpu_custom_call.1} parent=1 // pred_check_branch
      %822 = sbr.rel (0) target = $region33
    $region32: #{tpu_custom_call.1} parent=1 // pred_region
      %824 = dma.done [#allocation5], 128
    $region33: #{tpu_custom_call.1} parent=1 // pred_fallthru
      _
    %825 = vsyncpa [#allocation4], 1
    %826 = vsyncpa [#allocation5], 1

// kernel: tpu_custom_call.1
$region0: #{tpu_custom_call.1}
  #allocation0 [shape = 'u32[]', space=smem, size = 0x4, offset = 0x4, fixed_abs, tag = 'smem constant byte address 0x4 - core index']
  #allocation1 [shape = 'u32[72,128]{1,0:T(1,128)}', space=vmem, size = 0x9000, scoped, tag = 'internal scratch']
  #allocation2 [shape = 'f32[64,128]{1,0:T(8,128)}', space=vmem, size = 0x8000, scoped, tag = 'scratch operand']
  %s0 = inlined_call_operand.vmem [shape: bf16[64,48], index: 0, kind: input, shape index: {}]
  %s1 = inlined_call_operand.vmem [shape: bf16[48,128], index: 1, kind: input, shape index: {}]
  %s2 = inlined_call_operand.vmem [shape: f32[1,128], index: 2, kind: input, shape index: {}]
  %s3 = inlined_call_operand.hbm [shape: bf16[1024,128], index: 3, kind: input, shape index: {}]
  %s4 = inlined_call_operand.vmem [shape: f32[1,128], index: 4, kind: input, shape index: {}]
  %s5 = inlined_call_operand.hbm [shape: f32[8,128], index: 5, kind: output, shape index: {}]
  %s6 = sld [smem:[#allocation0]]
  $region34: #{tpu_custom_call.1} parent=0
    _
  %s8 = ssub.s32 1, %s6
  %s9 = scalar_select 0, %s8, %s6
  $region1: #{tpu_custom_call.1} parent=0
    #allocation3 [shape = 'u8[262144]{0}', space=vmem, size = 0x40000, scoped, tag = 'input window, operand 3, single buffered']
    #allocation4 [shape = 's32[1]{0}', space=sflag, size = 0x4, scoped, tag = 'scoped memory for tpu_custom_call.1']
    #allocation5 [shape = 's32[1]{0}', space=sflag, size = 0x4, scoped, tag = 'scoped memory for tpu_custom_call.1']
    #allocation6 [shape = 'u8[4096]{0}', space=vmem, size = 0x1000, scoped, tag = 'output window, operand 0, single buffered']
    %10 = vsyncpa [#allocation4], 0
    %11 = vsyncpa [#allocation5], 0
    // Predicated region
    $region2: #{tpu_custom_call.1} parent=1 // pred_check
      _
    $region3: #{tpu_custom_call.1} parent=1 // pred_check_branch
      %13 = sbr.rel (0) target = $region5
    $region4: #{tpu_custom_call.1} parent=1 // pred_region
      _
    $region5: #{tpu_custom_call.1} parent=1 // pred_fallthru
      _
    // Predicated region
    $region6: #{tpu_custom_call.1} parent=1 // pred_check
      _
    $region7: #{tpu_custom_call.1} parent=1 // pred_check_branch
      %15 = sbr.rel (0) target = $region9
    $region8: #{tpu_custom_call.1} parent=1 // pred_region
      _
    $region9: #{tpu_custom_call.1} parent=1 // pred_fallthru
      _
    // Predicated region
    $region10: #{tpu_custom_call.1} parent=1 // pred_check
      _
    $region11: #{tpu_custom_call.1} parent=1 // pred_check_branch
      %17 = sbr.rel (0) target = $region13
    $region12: #{tpu_custom_call.1} parent=1 // pred_region
      _
    $region13: #{tpu_custom_call.1} parent=1 // pred_fallthru
      _
    // Predicated region
    $region14: #{tpu_custom_call.1} parent=1 // pred_check
      _
    $region15: #{tpu_custom_call.1} parent=1 // pred_check_branch
      %19 = sbr.rel (0) target = $region17
    $region16: #{tpu_custom_call.1} parent=1 // pred_region
      %21 = vsyncadd [#allocation4], 0
      %s22 = sshll.u32 %s3, 4
      %s23 = int_to_ptr.hbm [resolvable:$true] %s22
      %s24 = sshll.u32 [#allocation3], 4
      %s25 = int_to_ptr.vmem [resolvable:$true] %s24
      %30 = dma.hbm_to_vmem [thread:$0]  %s23, 8192, %s25, [#allocation4], 64, 64, 4
    $region17: #{tpu_custom_call.1} parent=1 // pred_fallthru
      _
    // Predicated region
    $region18: #{tpu_custom_call.1} parent=1 // pred_check
      _
    $region19: #{tpu_custom_call.1} parent=1 // pred_check_branch
      %32 = sbr.rel (0) target = $region21
    $region20: #{tpu_custom_call.1} parent=1 // pred_region
      _
    $region21: #{tpu_custom_call.1} parent=1 // pred_fallthru
      _
    // Predicated region
    $region22: #{tpu_custom_call.1} parent=1 // pred_check
      _
    $region23: #{tpu_custom_call.1} parent=1 // pred_check_branch
      %34 = sbr.rel (0) target = $region25
    $region24: #{tpu_custom_call.1} parent=1 // pred_region
      %36 = dma.done [#allocation4], 8192
    $region25: #{tpu_custom_call.1} parent=1 // pred_fallthru
      _
    %v38 = vld [vmem:[%s0] sm:$0xf]
    %v39 = vld [vmem:[%s0 + $0x4] sm:$0xf]
    %v40 = vld [vmem:[%s0 + $0x8] sm:$0xf]
    %v41 = vld [vmem:[%s0 + $0xc] sm:$0xf]
    %v42 = vld [vmem:[%s0 + $0x10] sm:$0xf]
    %v43 = vld [vmem:[%s0 + $0x14] sm:$0xf]
    %v44 = vld [vmem:[%s0 + $0x18] sm:$0xf]
    %v45 = vld [vmem:[%s0 + $0x1c] sm:$0xf]
    %v46 = vld [vmem:[%s1] sm:$0xf]
    %v47 = vld [vmem:[%s1 + $0x4] sm:$0xf]
    %v48 = vld [vmem:[%s1 + $0x8] sm:$0xf]
    %v49 = vld [vmem:[%s1 + $0xc] sm:$0xf]
    %v50 = vld [vmem:[%s1 + $0x10] sm:$0xf]
    %v51 = vld [vmem:[%s1 + $0x14] sm:$0xf]
    %v52 = vld [vmem:[%s2] sm:$0x1]
    %v54 = vperm.slane %v52, 0
    %v64 = vunpack.c.l.b16 %v38
    %v65 = vunpack.c.l.b16 %v39
    %v66 = vunpack.c.l.b16 %v40
    %v67 = vunpack.c.l.b16 %v41
    %v68 = vunpack.c.l.b16 %v42
    %v69 = vunpack.c.l.b16 %v43
    %v70 = vunpack.c.l.b16 %v44
    %v71 = vunpack.c.l.b16 %v45
    %v72 = vpack.c.b16 %v65, %v64
    %v73 = vpack.c.b16 %v67, %v66
    %v74 = vpack.c.b16 %v69, %v68
    %v75 = vpack.c.b16 %v71, %v70
    %v82 = vunpack.c.l.b16 %v46
    %v83 = vunpack.c.l.b16 %v47
    %v84 = vunpack.c.l.b16 %v48
    %v85 = vunpack.c.l.b16 %v49
    %v86 = vunpack.c.l.b16 %v50
    %v87 = vunpack.c.l.b16 %v51
    %v88 = vpack.c.b16 %v83, %v82
    %v89 = vpack.c.b16 %v85, %v84
    %v90 = vpack.c.b16 %v87, %v86
    %vm94 = vcmask 392192
    %v96 = vsel %vm94, %v72, 0
    %v99 = vsel %vm94, %v73, 0
    %v102 = vsel %vm94, %v74, 0
    %v105 = vsel %vm94, %v75, 0
    %107 = vmatpush.bf16.msra.mxu0 0
    %108 = vmatpush.bf16.msra.mxu0 0
    %109 = vmatpush.bf16.msra.mxu0 0
    %110 = vmatpush.bf16.msra.mxu0 0
    %111 = vmatpush.bf16.msra.mxu0 0
    %112 = vmatpush.bf16.msra.mxu0 %v90
    %113 = vmatpush.bf16.msra.mxu0 %v89
    %114 = vmatpush.bf16.msra.mxu0 %v88
    %115 = vmatmul.bf16.gmra.mxu0 %v96
    %v116 = vpop.f32.mrf.mxu0
    %v117 = vadd.f32 %v54, %v116
    %v118 = vpop.f32.mrf.mxu0
    %v119 = vadd.f32 %v54, %v118
    %120 = vmatmul.bf16.gmra.mxu0 %v99
    %v121 = vpop.f32.mrf.mxu0
    %v122 = vadd.f32 %v54, %v121
    %v123 = vpop.f32.mrf.mxu0
    %v124 = vadd.f32 %v54, %v123
    %125 = vmatmul.bf16.gmra.mxu0 %v102
    %v126 = vpop.f32.mrf.mxu0
    %v127 = vadd.f32 %v54, %v126
    %v128 = vpop.f32.mrf.mxu0
    %v129 = vadd.f32 %v54, %v128
    %130 = vmatmul.bf16.gmra.mxu0 %v105
    %v131 = vpop.f32.mrf.mxu0
    %v132 = vadd.f32 %v54, %v131
    %v133 = vpop.f32.mrf.mxu0
    %v134 = vadd.f32 %v54, %v133
    %135 = vdwg.mxu0
    %v136 = vmax.f32 %v117, 0.0
    %v137 = vmax.f32 %v119, 0.0
    %v138 = vmax.f32 %v122, 0.0
    %v139 = vmax.f32 %v124, 0.0
    %v140 = vmax.f32 %v127, 0.0
    %v141 = vmax.f32 %v129, 0.0
    %v142 = vmax.f32 %v132, 0.0
    %v143 = vmax.f32 %v134, 0.0
    %144 = vst [vmem:[#allocation2] sm:$0xff] %v136
    %145 = vst [vmem:[#allocation2 + $0x8] sm:$0xff] %v137
    %146 = vst [vmem:[#allocation2 + $0x10] sm:$0xff] %v138
    %147 = vst [vmem:[#allocation2 + $0x18] sm:$0xff] %v139
    %148 = vst [vmem:[#allocation2 + $0x20] sm:$0xff] %v140
    %149 = vst [vmem:[#allocation2 + $0x28] sm:$0xff] %v141
    %150 = vst [vmem:[#allocation2 + $0x30] sm:$0xff] %v142
    %151 = vst [vmem:[#allocation2 + $0x38] sm:$0xff] %v143
    %v152 = vld [vmem:[#allocation2] sm:$0xff]
    %v153 = vpack.c.bf16 %v152, %v152
    %v154 = vld [vmem:[#allocation3] sm:$0xf]
    %v155 = vld [vmem:[#allocation3 + $0x4] sm:$0xf]
    %v156 = vld [vmem:[#allocation3 + $0x8] sm:$0xf]
    %v157 = vld [vmem:[#allocation3 + $0xc] sm:$0xf]
    %v158 = vld [vmem:[#allocation3 + $0x10] sm:$0xf]
    %v159 = vld [vmem:[#allocation3 + $0x14] sm:$0xf]
    %v160 = vld [vmem:[#allocation3 + $0x18] sm:$0xf]
    %v161 = vld [vmem:[#allocation3 + $0x1c] sm:$0xf]
    %v162 = vld [vmem:[#allocation3 + $0x20] sm:$0xf]
    %v163 = vld [vmem:[#allocation3 + $0x24] sm:$0xf]
    %v164 = vld [vmem:[#allocation3 + $0x28] sm:$0xf]
    %v165 = vld [vmem:[#allocation3 + $0x2c] sm:$0xf]
    %v166 = vld [vmem:[#allocation3 + $0x30] sm:$0xf]
    %v167 = vld [vmem:[#allocation3 + $0x34] sm:$0xf]
    %v168 = vld [vmem:[#allocation3 + $0x38] sm:$0xf]
    %v169 = vld [vmem:[#allocation3 + $0x3c] sm:$0xf]
    %s170 = scalar_lea.vmem [#allocation2], 8
    %v171 = vld [vmem:[%s170] sm:$0xff]
    %v172 = vpack.c.bf16 %v171, %v171
    %s173 = scalar_lea.vmem [#allocation3], 64
    %v174 = vld [vmem:[%s173] sm:$0xf]
    %v175 = vld [vmem:[%s173 + $0x4] sm:$0xf]
    %v176 = vld [vmem:[%s173 + $0x8] sm:$0xf]
    %v177 = vld [vmem:[%s173 + $0xc] sm:$0xf]
    %v178 = vld [vmem:[%s173 + $0x10] sm:$0xf]
    %v179 = vld [vmem:[%s173 + $0x14] sm:$0xf]
    %v180 = vld [vmem:[%s173 + $0x18] sm:$0xf]
    %v181 = vld [vmem:[%s173 + $0x1c] sm:$0xf]
    %v182 = vld [vmem:[%s173 + $0x20] sm:$0xf]
    %v183 = vld [vmem:[%s173 + $0x24] sm:$0xf]
    %v184 = vld [vmem:[%s173 + $0x28] sm:$0xf]
    %v185 = vld [vmem:[%s173 + $0x2c] sm:$0xf]
    %v186 = vld [vmem:[%s173 + $0x30] sm:$0xf]
    %v187 = vld [vmem:[%s173 + $0x34] sm:$0xf]
    %v188 = vld [vmem:[%s173 + $0x38] sm:$0xf]
    %v189 = vld [vmem:[%s173 + $0x3c] sm:$0xf]
    %v206 = vunpack.c.l.b16 %v174
    %v207 = vunpack.c.l.b16 %v175
    %v208 = vunpack.c.l.b16 %v176
    %v209 = vunpack.c.l.b16 %v177
    %v210 = vunpack.c.l.b16 %v178
    %v211 = vunpack.c.l.b16 %v179
    %v212 = vunpack.c.l.b16 %v180
    %v213 = vunpack.c.l.b16 %v181
    %v214 = vunpack.c.l.b16 %v182
    %v215 = vunpack.c.l.b16 %v183
    %v216 = vunpack.c.l.b16 %v184
    %v217 = vunpack.c.l.b16 %v185
    %v218 = vunpack.c.l.b16 %v186
    %v219 = vunpack.c.l.b16 %v187
    %v220 = vunpack.c.l.b16 %v188
    %v221 = vunpack.c.l.b16 %v189
    %v222 = vpack.c.b16 %v207, %v206
    %v223 = vpack.c.b16 %v209, %v208
    %v224 = vpack.c.b16 %v211, %v210
    %v225 = vpack.c.b16 %v213, %v212
    %v226 = vpack.c.b16 %v215, %v214
    %v227 = vpack.c.b16 %v217, %v216
    %v228 = vpack.c.b16 %v219, %v218
    %v229 = vpack.c.b16 %v221, %v220
    %238 = vmatpush.bf16.msra.mxu0 %v229
    %239 = vmatpush.bf16.msra.mxu0 %v228
    %240 = vmatpush.bf16.msra.mxu0 %v227
    %241 = vmatpush.bf16.msra.mxu0 %v226
    %242 = vmatpush.bf16.msra.mxu0 %v225
    %243 = vmatpush.bf16.msra.mxu0 %v224
    %244 = vmatpush.bf16.msra.mxu0 %v223
    %245 = vmatpush.bf16.msra.mxu0 %v222
    %246 = vmatmul.bf16.gmra.mxu0 %v172
    %v247 = vpop.f32.mrf.mxu0
    %v248 = vadd.f32 0.0, %v247
    %v249 = vpop.f32.mrf.mxu0
    %250 = vdwg.mxu0
    %v267 = vunpack.c.l.b16 %v154
    %v268 = vunpack.c.l.b16 %v155
    %v269 = vunpack.c.l.b16 %v156
    %v270 = vunpack.c.l.b16 %v157
    %v271 = vunpack.c.l.b16 %v158
    %v272 = vunpack.c.l.b16 %v159
    %v273 = vunpack.c.l.b16 %v160
    %v274 = vunpack.c.l.b16 %v161
    %v275 = vunpack.c.l.b16 %v162
    %v276 = vunpack.c.l.b16 %v163
    %v277 = vunpack.c.l.b16 %v164
    %v278 = vunpack.c.l.b16 %v165
    %v279 = vunpack.c.l.b16 %v166
    %v280 = vunpack.c.l.b16 %v167
    %v281 = vunpack.c.l.b16 %v168
    %v282 = vunpack.c.l.b16 %v169
    %v283 = vpack.c.b16 %v268, %v267
    %v284 = vpack.c.b16 %v270, %v269
    %v285 = vpack.c.b16 %v272, %v271
    %v286 = vpack.c.b16 %v274, %v273
    %v287 = vpack.c.b16 %v276, %v275
    %v288 = vpack.c.b16 %v278, %v277
    %v289 = vpack.c.b16 %v280, %v279
    %v290 = vpack.c.b16 %v282, %v281
    %299 = vmatpush.bf16.msra.mxu0 %v290
    %300 = vmatpush.bf16.msra.mxu0 %v289
    %301 = vmatpush.bf16.msra.mxu0 %v288
    %302 = vmatpush.bf16.msra.mxu0 %v287
    %303 = vmatpush.bf16.msra.mxu0 %v286
    %304 = vmatpush.bf16.msra.mxu0 %v285
    %305 = vmatpush.bf16.msra.mxu0 %v284
    %306 = vmatpush.bf16.msra.mxu0 %v283
    %307 = vmatmul.bf16.gmra.mxu0 %v153
    %v308 = vpop.f32.mrf.mxu0
    %v309 = vadd.f32 %v248, %v308
    %v310 = vpop.f32.mrf.mxu0
    %311 = vdwg.mxu0
    %s312 = scalar_lea.vmem [#allocation2], 16
    %v313 = vld [vmem:[%s312] sm:$0xff]
    %v314 = vpack.c.bf16 %v313, %v313
    %s315 = scalar_lea.vmem [#allocation3], 128
    %v316 = vld [vmem:[%s315] sm:$0xf]
    %v317 = vld [vmem:[%s315 + $0x4] sm:$0xf]
    %v318 = vld [vmem:[%s315 + $0x8] sm:$0xf]
    %v319 = vld [vmem:[%s315 + $0xc] sm:$0xf]
    %v320 = vld [vmem:[%s315 + $0x10] sm:$0xf]
    %v321 = vld [vmem:[%s315 + $0x14] sm:$0xf]
    %v322 = vld [vmem:[%s315 + $0x18] sm:$0xf]
    %v323 = vld [vmem:[%s315 + $0x1c] sm:$0xf]
    %v324 = vld [vmem:[%s315 + $0x20] sm:$0xf]
    %v325 = vld [vmem:[%s315 + $0x24] sm:$0xf]
    %v326 = vld [vmem:[%s315 + $0x28] sm:$0xf]
    %v327 = vld [vmem:[%s315 + $0x2c] sm:$0xf]
    %v328 = vld [vmem:[%s315 + $0x30] sm:$0xf]
    %v329 = vld [vmem:[%s315 + $0x34] sm:$0xf]
    %v330 = vld [vmem:[%s315 + $0x38] sm:$0xf]
    %v331 = vld [vmem:[%s315 + $0x3c] sm:$0xf]
    %v348 = vunpack.c.l.b16 %v316
    %v349 = vunpack.c.l.b16 %v317
    %v350 = vunpack.c.l.b16 %v318
    %v351 = vunpack.c.l.b16 %v319
    %v352 = vunpack.c.l.b16 %v320
    %v353 = vunpack.c.l.b16 %v321
    %v354 = vunpack.c.l.b16 %v322
    %v355 = vunpack.c.l.b16 %v323
    %v356 = vunpack.c.l.b16 %v324
    %v357 = vunpack.c.l.b16 %v325
    %v358 = vunpack.c.l.b16 %v326
    %v359 = vunpack.c.l.b16 %v327
    %v360 = vunpack.c.l.b16 %v328
    %v361 = vunpack.c.l.b16 %v329
    %v362 = vunpack.c.l.b16 %v330
    %v363 = vunpack.c.l.b16 %v331
    %v364 = vpack.c.b16 %v349, %v348
    %v365 = vpack.c.b16 %v351, %v350
    %v366 = vpack.c.b16 %v353, %v352
    %v367 = vpack.c.b16 %v355, %v354
    %v368 = vpack.c.b16 %v357, %v356
    %v369 = vpack.c.b16 %v359, %v358
    %v370 = vpack.c.b16 %v361, %v360
    %v371 = vpack.c.b16 %v363, %v362
    %380 = vmatpush.bf16.msra.mxu0 %v371
    %381 = vmatpush.bf16.msra.mxu0 %v370
    %382 = vmatpush.bf16.msra.mxu0 %v369
    %383 = vmatpush.bf16.msra.mxu0 %v368
    %384 = vmatpush.bf16.msra.mxu0 %v367
    %385 = vmatpush.bf16.msra.mxu0 %v366
    %386 = vmatpush.bf16.msra.mxu0 %v365
    %387 = vmatpush.bf16.msra.mxu0 %v364
    %388 = vmatmul.bf16.gmra.mxu0 %v314
    %v389 = vpop.f32.mrf.mxu0
    %v390 = vadd.f32 0.0, %v389
    %v391 = vpop.f32.mrf.mxu0
    %392 = vdwg.mxu0
    %v393 = vadd.f32 %v309, %v390
    %s394 = scalar_lea.vmem [#allocation2], 24
    %v395 = vld [vmem:[%s394] sm:$0xff]
    %v396 = vpack.c.bf16 %v395, %v395
    %s397 = scalar_lea.vmem [#allocation3], 192
    %v398 = vld [vmem:[%s397] sm:$0xf]
    %v399 = vld [vmem:[%s397 + $0x4] sm:$0xf]
    %v400 = vld [vmem:[%s397 + $0x8] sm:$0xf]
    %v401 = vld [vmem:[%s397 + $0xc] sm:$0xf]
    %v402 = vld [vmem:[%s397 + $0x10] sm:$0xf]
    %v403 = vld [vmem:[%s397 + $0x14] sm:$0xf]
    %v404 = vld [vmem:[%s397 + $0x18] sm:$0xf]
    %v405 = vld [vmem:[%s397 + $0x1c] sm:$0xf]
    %v406 = vld [vmem:[%s397 + $0x20] sm:$0xf]
    %v407 = vld [vmem:[%s397 + $0x24] sm:$0xf]
    %v408 = vld [vmem:[%s397 + $0x28] sm:$0xf]
    %v409 = vld [vmem:[%s397 + $0x2c] sm:$0xf]
    %v410 = vld [vmem:[%s397 + $0x30] sm:$0xf]
    %v411 = vld [vmem:[%s397 + $0x34] sm:$0xf]
    %v412 = vld [vmem:[%s397 + $0x38] sm:$0xf]
    %v413 = vld [vmem:[%s397 + $0x3c] sm:$0xf]
    %v430 = vunpack.c.l.b16 %v398
    %v431 = vunpack.c.l.b16 %v399
    %v432 = vunpack.c.l.b16 %v400
    %v433 = vunpack.c.l.b16 %v401
    %v434 = vunpack.c.l.b16 %v402
    %v435 = vunpack.c.l.b16 %v403
    %v436 = vunpack.c.l.b16 %v404
    %v437 = vunpack.c.l.b16 %v405
    %v438 = vunpack.c.l.b16 %v406
    %v439 = vunpack.c.l.b16 %v407
    %v440 = vunpack.c.l.b16 %v408
    %v441 = vunpack.c.l.b16 %v409
    %v442 = vunpack.c.l.b16 %v410
    %v443 = vunpack.c.l.b16 %v411
    %v444 = vunpack.c.l.b16 %v412
    %v445 = vunpack.c.l.b16 %v413
    %v446 = vpack.c.b16 %v431, %v430
    %v447 = vpack.c.b16 %v433, %v432
    %v448 = vpack.c.b16 %v435, %v434
    %v449 = vpack.c.b16 %v437, %v436
    %v450 = vpack.c.b16 %v439, %v438
    %v451 = vpack.c.b16 %v441, %v440
    %v452 = vpack.c.b16 %v443, %v442
    %v453 = vpack.c.b16 %v445, %v444
    %462 = vmatpush.bf16.msra.mxu0 %v453
    %463 = vmatpush.bf16.msra.mxu0 %v452
    %464 = vmatpush.bf16.msra.mxu0 %v451
    %465 = vmatpush.bf16.msra.mxu0 %v450
    %466 = vmatpush.bf16.msra.mxu0 %v449
    %467 = vmatpush.bf16.msra.mxu0 %v448
    %468 = vmatpush.bf16.msra.mxu0 %v447
    %469 = vmatpush.bf16.msra.mxu0 %v446
    %470 = vmatmul.bf16.gmra.mxu0 %v396
    %v471 = vpop.f32.mrf.mxu0
    %v472 = vadd.f32 0.0, %v471
    %v473 = vpop.f32.mrf.mxu0
    %474 = vdwg.mxu0
    %v475 = vadd.f32 %v393, %v472
    %s476 = scalar_lea.vmem [#allocation2], 32
    %v477 = vld [vmem:[%s476] sm:$0xff]
    %v478 = vpack.c.bf16 %v477, %v477
    %s479 = scalar_lea.vmem [#allocation3], 256
    %v480 = vld [vmem:[%s479] sm:$0xf]
    %v481 = vld [vmem:[%s479 + $0x4] sm:$0xf]
    %v482 = vld [vmem:[%s479 + $0x8] sm:$0xf]
    %v483 = vld [vmem:[%s479 + $0xc] sm:$0xf]
    %v484 = vld [vmem:[%s479 + $0x10] sm:$0xf]
    %v485 = vld [vmem:[%s479 + $0x14] sm:$0xf]
    %v486 = vld [vmem:[%s479 + $0x18] sm:$0xf]
    %v487 = vld [vmem:[%s479 + $0x1c] sm:$0xf]
    %v488 = vld [vmem:[%s479 + $0x20] sm:$0xf]
    %v489 = vld [vmem:[%s479 + $0x24] sm:$0xf]
    %v490 = vld [vmem:[%s479 + $0x28] sm:$0xf]
    %v491 = vld [vmem:[%s479 + $0x2c] sm:$0xf]
    %v492 = vld [vmem:[%s479 + $0x30] sm:$0xf]
    %v493 = vld [vmem:[%s479 + $0x34] sm:$0xf]
    %v494 = vld [vmem:[%s479 + $0x38] sm:$0xf]
    %v495 = vld [vmem:[%s479 + $0x3c] sm:$0xf]
    %v512 = vunpack.c.l.b16 %v480
    %v513 = vunpack.c.l.b16 %v481
    %v514 = vunpack.c.l.b16 %v482
    %v515 = vunpack.c.l.b16 %v483
    %v516 = vunpack.c.l.b16 %v484
    %v517 = vunpack.c.l.b16 %v485
    %v518 = vunpack.c.l.b16 %v486
    %v519 = vunpack.c.l.b16 %v487
    %v520 = vunpack.c.l.b16 %v488
    %v521 = vunpack.c.l.b16 %v489
    %v522 = vunpack.c.l.b16 %v490
    %v523 = vunpack.c.l.b16 %v491
    %v524 = vunpack.c.l.b16 %v492
    %v525 = vunpack.c.l.b16 %v493
    %v526 = vunpack.c.l.b16 %v494
    %v527 = vunpack.c.l.b16 %v495
    %v528 = vpack.c.b16 %v513, %v512
    %v529 = vpack.c.b16 %v515, %v514
    %v530 = vpack.c.b16 %v517, %v516
    %v531 = vpack.c.b16 %v519, %v518
    %v532 = vpack.c.b16 %v521, %v520
    %v533 = vpack.c.b16 %v523, %v522
    %v534 = vpack.c.b16 %v525, %v524
    %v535 = vpack.c.b16 %v527, %v526
    %544 = vmatpush.bf16.msra.mxu0 %v535
    %545 = vmatpush.bf16.msra.mxu0 %v534
    %546 = vmatpush.bf16.msra.mxu0 %v533
    %547 = vmatpush.bf16.msra.mxu0 %v532
    %548 = vmatpush.bf16.msra.mxu0 %v531
    %549 = vmatpush.bf16.msra.mxu0 %v530
    %550 = vmatpush.bf16.msra.mxu0 %v529
    %551 = vmatpush.bf16.msra.mxu0 %v528
    %552 = vmatmul.bf16.gmra.mxu0 %v478
    %v553 = vpop.f32.mrf.mxu0
    %v554 = vadd.f32 0.0, %v553
    %v555 = vpop.f32.mrf.mxu0
    %556 = vdwg.mxu0
    %v557 = vadd.f32 %v475, %v554
    %s558 = scalar_lea.vmem [#allocation2], 40
    %v559 = vld [vmem:[%s558] sm:$0xff]
    %v560 = vpack.c.bf16 %v559, %v559
    %s561 = scalar_lea.vmem [#allocation3], 320
    %v562 = vld [vmem:[%s561] sm:$0xf]
    %v563 = vld [vmem:[%s561 + $0x4] sm:$0xf]
    %v564 = vld [vmem:[%s561 + $0x8] sm:$0xf]
    %v565 = vld [vmem:[%s561 + $0xc] sm:$0xf]
    %v566 = vld [vmem:[%s561 + $0x10] sm:$0xf]
    %v567 = vld [vmem:[%s561 + $0x14] sm:$0xf]
    %v568 = vld [vmem:[%s561 + $0x18] sm:$0xf]
    %v569 = vld [vmem:[%s561 + $0x1c] sm:$0xf]
    %v570 = vld [vmem:[%s561 + $0x20] sm:$0xf]
    %v571 = vld [vmem:[%s561 + $0x24] sm:$0xf]
    %v572 = vld [vmem:[%s561 + $0x28] sm:$0xf]
    %v573 = vld [vmem:[%s561 + $0x2c] sm:$0xf]
    %v574 = vld [vmem:[%s561 + $0x30] sm:$0xf]
    %v575 = vld [vmem:[%s561 + $0x34] sm:$0xf]
    %v576 = vld [vmem:[%s561 + $0x38] sm:$0xf]
    %v577 = vld [vmem:[%s561 + $0x3c] sm:$0xf]
    %v594 = vunpack.c.l.b16 %v562
    %v595 = vunpack.c.l.b16 %v563
    %v596 = vunpack.c.l.b16 %v564
    %v597 = vunpack.c.l.b16 %v565
    %v598 = vunpack.c.l.b16 %v566
    %v599 = vunpack.c.l.b16 %v567
    %v600 = vunpack.c.l.b16 %v568
    %v601 = vunpack.c.l.b16 %v569
    %v602 = vunpack.c.l.b16 %v570
    %v603 = vunpack.c.l.b16 %v571
    %v604 = vunpack.c.l.b16 %v572
    %v605 = vunpack.c.l.b16 %v573
    %v606 = vunpack.c.l.b16 %v574
    %v607 = vunpack.c.l.b16 %v575
    %v608 = vunpack.c.l.b16 %v576
    %v609 = vunpack.c.l.b16 %v577
    %v610 = vpack.c.b16 %v595, %v594
    %v611 = vpack.c.b16 %v597, %v596
    %v612 = vpack.c.b16 %v599, %v598
    %v613 = vpack.c.b16 %v601, %v600
    %v614 = vpack.c.b16 %v603, %v602
    %v615 = vpack.c.b16 %v605, %v604
    %v616 = vpack.c.b16 %v607, %v606
    %v617 = vpack.c.b16 %v609, %v608
    %626 = vmatpush.bf16.msra.mxu0 %v617
    %627 = vmatpush.bf16.msra.mxu0 %v616
    %628 = vmatpush.bf16.msra.mxu0 %v615
    %629 = vmatpush.bf16.msra.mxu0 %v614
    %630 = vmatpush.bf16.msra.mxu0 %v613
    %631 = vmatpush.bf16.msra.mxu0 %v612
    %632 = vmatpush.bf16.msra.mxu0 %v611
    %633 = vmatpush.bf16.msra.mxu0 %v610
    %634 = vmatmul.bf16.gmra.mxu0 %v560
    %v635 = vpop.f32.mrf.mxu0
    %v636 = vadd.f32 0.0, %v635
    %v637 = vpop.f32.mrf.mxu0
    %638 = vdwg.mxu0
    %v639 = vadd.f32 %v557, %v636
    %s640 = scalar_lea.vmem [#allocation2], 48
    %v641 = vld [vmem:[%s640] sm:$0xff]
    %v642 = vpack.c.bf16 %v641, %v641
    %s643 = scalar_lea.vmem [#allocation3], 384
    %v644 = vld [vmem:[%s643] sm:$0xf]
    %v645 = vld [vmem:[%s643 + $0x4] sm:$0xf]
    %v646 = vld [vmem:[%s643 + $0x8] sm:$0xf]
    %v647 = vld [vmem:[%s643 + $0xc] sm:$0xf]
    %v648 = vld [vmem:[%s643 + $0x10] sm:$0xf]
    %v649 = vld [vmem:[%s643 + $0x14] sm:$0xf]
    %v650 = vld [vmem:[%s643 + $0x18] sm:$0xf]
    %v651 = vld [vmem:[%s643 + $0x1c] sm:$0xf]
    %v652 = vld [vmem:[%s643 + $0x20] sm:$0xf]
    %v653 = vld [vmem:[%s643 + $0x24] sm:$0xf]
    %v654 = vld [vmem:[%s643 + $0x28] sm:$0xf]
    %v655 = vld [vmem:[%s643 + $0x2c] sm:$0xf]
    %v656 = vld [vmem:[%s643 + $0x30] sm:$0xf]
    %v657 = vld [vmem:[%s643 + $0x34] sm:$0xf]
    %v658 = vld [vmem:[%s643 + $0x38] sm:$0xf]
    %v659 = vld [vmem:[%s643 + $0x3c] sm:$0xf]
    %v676 = vunpack.c.l.b16 %v644
    %v677 = vunpack.c.l.b16 %v645
    %v678 = vunpack.c.l.b16 %v646
    %v679 = vunpack.c.l.b16 %v647
    %v680 = vunpack.c.l.b16 %v648
    %v681 = vunpack.c.l.b16 %v649
    %v682 = vunpack.c.l.b16 %v650
    %v683 = vunpack.c.l.b16 %v651
    %v684 = vunpack.c.l.b16 %v652
    %v685 = vunpack.c.l.b16 %v653
    %v686 = vunpack.c.l.b16 %v654
    %v687 = vunpack.c.l.b16 %v655
    %v688 = vunpack.c.l.b16 %v656
    %v689 = vunpack.c.l.b16 %v657
    %v690 = vunpack.c.l.b16 %v658
    %v691 = vunpack.c.l.b16 %v659
    %v692 = vpack.c.b16 %v677, %v676
    %v693 = vpack.c.b16 %v679, %v678
    %v694 = vpack.c.b16 %v681, %v680
    %v695 = vpack.c.b16 %v683, %v682
    %v696 = vpack.c.b16 %v685, %v684
    %v697 = vpack.c.b16 %v687, %v686
    %v698 = vpack.c.b16 %v689, %v688
    %v699 = vpack.c.b16 %v691, %v690
    %708 = vmatpush.bf16.msra.mxu0 %v699
    %709 = vmatpush.bf16.msra.mxu0 %v698
    %710 = vmatpush.bf16.msra.mxu0 %v697
    %711 = vmatpush.bf16.msra.mxu0 %v696
    %712 = vmatpush.bf16.msra.mxu0 %v695
    %713 = vmatpush.bf16.msra.mxu0 %v694
    %714 = vmatpush.bf16.msra.mxu0 %v693
    %715 = vmatpush.bf16.msra.mxu0 %v692
    %716 = vmatmul.bf16.gmra.mxu0 %v642
    %v717 = vpop.f32.mrf.mxu0
    %v718 = vadd.f32 0.0, %v717
    %v719 = vpop.f32.mrf.mxu0
    %720 = vdwg.mxu0
    %v721 = vadd.f32 %v639, %v718
    %s722 = scalar_lea.vmem [#allocation2], 56
    %v723 = vld [vmem:[%s722] sm:$0xff]
    %v724 = vpack.c.bf16 %v723, %v723
    %s725 = scalar_lea.vmem [#allocation3], 448
    %v726 = vld [vmem:[%s725] sm:$0xf]
    %v727 = vld [vmem:[%s725 + $0x4] sm:$0xf]
    %v728 = vld [vmem:[%s725 + $0x8] sm:$0xf]
    %v729 = vld [vmem:[%s725 + $0xc] sm:$0xf]
    %v730 = vld [vmem:[%s725 + $0x10] sm:$0xf]
    %v731 = vld [vmem:[%s725 + $0x14] sm:$0xf]
    %v732 = vld [vmem:[%s725 + $0x18] sm:$0xf]
    %v733 = vld [vmem:[%s725 + $0x1c] sm:$0xf]
    %v734 = vld [vmem:[%s725 + $0x20] sm:$0xf]
    %v735 = vld [vmem:[%s725 + $0x24] sm:$0xf]
    %v736 = vld [vmem:[%s725 + $0x28] sm:$0xf]
    %v737 = vld [vmem:[%s725 + $0x2c] sm:$0xf]
    %v738 = vld [vmem:[%s725 + $0x30] sm:$0xf]
    %v739 = vld [vmem:[%s725 + $0x34] sm:$0xf]
    %v740 = vld [vmem:[%s725 + $0x38] sm:$0xf]
    %v741 = vld [vmem:[%s725 + $0x3c] sm:$0xf]
    %v758 = vunpack.c.l.b16 %v726
    %v759 = vunpack.c.l.b16 %v727
    %v760 = vunpack.c.l.b16 %v728
    %v761 = vunpack.c.l.b16 %v729
    %v762 = vunpack.c.l.b16 %v730
    %v763 = vunpack.c.l.b16 %v731
    %v764 = vunpack.c.l.b16 %v732
    %v765 = vunpack.c.l.b16 %v733
    %v766 = vunpack.c.l.b16 %v734
    %v767 = vunpack.c.l.b16 %v735
    %v768 = vunpack.c.l.b16 %v736
    %v769 = vunpack.c.l.b16 %v737
    %v770 = vunpack.c.l.b16 %v738
    %v771 = vunpack.c.l.b16 %v739
    %v772 = vunpack.c.l.b16 %v740
    %v773 = vunpack.c.l.b16 %v741
    %v774 = vpack.c.b16 %v759, %v758
    %v775 = vpack.c.b16 %v761, %v760
    %v776 = vpack.c.b16 %v763, %v762
    %v777 = vpack.c.b16 %v765, %v764
    %v778 = vpack.c.b16 %v767, %v766
    %v779 = vpack.c.b16 %v769, %v768
    %v780 = vpack.c.b16 %v771, %v770
    %v781 = vpack.c.b16 %v773, %v772
    %790 = vmatpush.bf16.msra.mxu0 %v781
    %791 = vmatpush.bf16.msra.mxu0 %v780
    %792 = vmatpush.bf16.msra.mxu0 %v779
    %793 = vmatpush.bf16.msra.mxu0 %v778
    %794 = vmatpush.bf16.msra.mxu0 %v777
    %795 = vmatpush.bf16.msra.mxu0 %v776
    %796 = vmatpush.bf16.msra.mxu0 %v775
    %797 = vmatpush.bf16.msra.mxu0 %v774
    %798 = vmatmul.bf16.gmra.mxu0 %v724
    %v799 = vpop.f32.mrf.mxu0
    %v800 = vadd.f32 0.0, %v799
    %v801 = vpop.f32.mrf.mxu0
    %802 = vdwg.mxu0
    %v803 = vadd.f32 %v721, %v800
    %v804 = vld [vmem:[%s4] sm:$0x1]
    %v806 = vperm.slane %v804, 0
    %v808 = vadd.f32 %v803, %v806
    %809 = vst [vmem:[#allocation6] sm:$0xff] %v808
    // Predicated region
    $region26: #{tpu_custom_call.1} parent=1 // pred_check
      _
    $region27: #{tpu_custom_call.1} parent=1 // pred_check_branch
      %811 = sbr.rel (0) target = $region29
    $region28: #{tpu_custom_call.1} parent=1 // pred_region
      %813 = vsyncadd [#allocation5], 0
      %s815 = sshll.u32 [#allocation6], 4
      %s816 = int_to_ptr.vmem [resolvable:$true] %s815
      %s817 = sshll.u32 %s5, 4
      %s818 = int_to_ptr.hbm [resolvable:$true] %s817
      %820 = dma.vmem_to_hbm [thread:$0]  %s816, 128, %s818, [#allocation5]
    $region29: #{tpu_custom_call.1} parent=1 // pred_fallthru
      _
    // Predicated region
    $region30: #{tpu_custom_call.1} parent=1 // pred_check
      _
    $region31: #{tpu_custom_call.1} parent=1 // pred_check_branch
      %822 = sbr.rel (0) target = $region33
    $region32: #{tpu_custom_call.1} parent=1 // pred_region
      %824 = dma.done [#allocation5], 128
    $region33: #{tpu_custom_call.1} parent=1 // pred_fallthru
      _
    %825 = vsyncpa [#allocation4], 1
    %826 = vsyncpa [#allocation5], 1

</llo_original>
